<compile_context>
chip_gen: v6e
topology: v6e:2x2x1
jax: 0.10.0
libtpu: 0.0.40
codegen_flags: <defaults>
</compile_context>

<pallas_src>
import jax
import jax.numpy as jnp
from jax.experimental import pallas as pl
from jax.experimental.pallas import tpu as pltpu

BN_EPS = 1e-5

# (B, K) x (N, K) -> (B, N): contract last dim of both (trans-B matmul).
_TRANS_B_DIMS = (((1,), (1,)), ((), ()))


def _mlp_kernel(x_ref, w1_ref, w2_ref, w3t_ref, pks_ref, pkb2_ref, o_ref):
    B = x_ref.shape[0]
    inv_b = 1.0 / B                        # static (batch known at trace time)

    x = x_ref[...]                         # (B, 3)
    w1 = w1_ref[...]                       # (3, 128)
    pks = pks_ref[...]                     # (8, 128)  packed small params
    pkb2 = pkb2_ref[...]                   # (3, 1024) packed BN2 params

    # Static slices of the packed parameter tiles (free).
    b1, g1, be1 = pks[0:1, :], pks[1:2, :], pks[2:3, :]          # (1,128)
    b3, g3, be3 = pks[3:4, 0:8], pks[4:5, 0:8], pks[5:6, 0:8]    # (1,8)
    w4r = pks[6:7, 0:8]                                          # (1,8) == w4.T
    b4 = pks[7:8, 0:1]                                           # (1,1)
    b2, g2, be2 = pkb2[0:1, :], pkb2[1:2, :], pkb2[2:3, :]       # (1,1024)

    def bn(h, gamma, beta):
        # One-pass batch statistics (PyTorch training-mode: biased variance).
        s = jnp.sum(h, axis=0, keepdims=True)
        ss = jnp.sum(h * h, axis=0, keepdims=True)
        mu = s * inv_b
        var = ss * inv_b - mu * mu
        return (h - mu) * jax.lax.rsqrt(var + BN_EPS) * gamma + beta

    # layer_1 (K=3): keep off the MXU — three VPU broadcast multiply-adds.
    h = (x[:, 0:1] * w1[0:1, :]
         + x[:, 1:2] * w1[1:2, :]
         + x[:, 2:3] * w1[2:3, :]) + b1
    h = jnp.maximum(h, 0.0)
    h = bn(h, g1, be1)

    # layer_2: the only real MXU work, (B,128) @ (128,1024).
    h = jnp.dot(h, w2_ref[...], preferred_element_type=jnp.float32) + b2
    h = jnp.maximum(h, 0.0)
    h = bn(h, g2, be2)

    # layer_3: contract against lane-dense transposed weights (8, 1024).
    h = jax.lax.dot_general(h, w3t_ref[...], _TRANS_B_DIMS,
                            preferred_element_type=jnp.float32) + b3
    h = jnp.maximum(h, 0.0)
    h = bn(h, g3, be3)

    # TODO(synk): nn.Dropout(p=0.0003) in training mode is a stochastic mask;
    # implemented here as identity (eval-mode / deterministic forward).

    # layer_out (8 -> 1): VPU multiply + tiny lane reduce instead of an MXU dot.
    o_ref[...] = jnp.sum(h * w4r, axis=-1, keepdims=True) + b4


def binary_classification_forward(x, packed_params):
    """x: (B, 3) float32, packed_params from pack_params() -> (B, 1) float32."""
    w1, w2, w3t, pk_small, pk_bn2 = packed_params
    B = x.shape[0]
    return pl.pallas_call(
        _mlp_kernel,
        out_shape=jax.ShapeDtypeStruct((B, 1), jnp.float32),
        # Single block, no grid: whole arrays resident in VMEM (< 1 MiB total).
        in_specs=[pl.BlockSpec(memory_space=pltpu.MemorySpace.VMEM)] * 6,
        out_specs=pl.BlockSpec(memory_space=pltpu.MemorySpace.VMEM),
    )(x, w1, w2, w3t, pk_small, pk_bn2)


def pack_params(params):
    """Pack the 14 natural-shape params into 5 lane-dense kernel operands.

    Returns (w1 (3,128), w2 (128,1024), w3t (8,1024),
             pk_small (8,128)  rows = [b1, g1, be1, b3|0, g3|0, be3|0, w4^T|0, b4|0],
             pk_bn2  (3,1024)  rows = [b2, g2, be2]).
    Done once outside the hot path (serving would cache this)."""
    (w1, b1, g1, be1, w2, b2, g2, be2, w3, b3, g3, be3, w4, b4) = params

    def row128(v):
        v = jnp.asarray(v, jnp.float32).reshape(1, -1)
        return jnp.pad(v, ((0, 0), (0, 128 - v.shape[1])))

    pk_small = jnp.concatenate(
        [b1.reshape(1, 128), g1.reshape(1, 128), be1.reshape(1, 128),
         row128(b3), row128(g3), row128(be3),
         row128(w4.reshape(1, -1)), row128(b4)], axis=0)          # (8, 128)
    pk_bn2 = jnp.concatenate(
        [b2.reshape(1, 1024), g2.reshape(1, 1024), be2.reshape(1, 1024)],
        axis=0)                                                   # (3, 1024)
    w3t = jnp.transpose(w3)                                       # (8, 1024)
    return (w1, w2, w3t, pk_small, pk_bn2)


def init_params(key):
    """PyTorch-style init: Linear ~ U(-1/sqrt(fan_in), 1/sqrt(fan_in)),
    BatchNorm gamma=1, beta=0. Biases / gamma / beta kept as (1, N)."""
    dims = [(3, 128), (128, 1024), (1024, 8), (8, 1)]
    keys = jax.random.split(key, 2 * len(dims))
    params = []
    bn_dims = [128, 1024, 8]
    for li, (fan_in, fan_out) in enumerate(dims):
        bound = 1.0 / jnp.sqrt(float(fan_in))
        w = jax.random.uniform(keys[2 * li], (fan_in, fan_out),
                               minval=-bound, maxval=bound, dtype=jnp.float32)
        b = jax.random.uniform(keys[2 * li + 1], (1, fan_out),
                               minval=-bound, maxval=bound, dtype=jnp.float32)
        params.extend([w, b])
        if li < 3:
            n = bn_dims[li]
            params.append(jnp.ones((1, n), jnp.float32))   # gamma
            params.append(jnp.zeros((1, n), jnp.float32))  # beta
    return tuple(params)


if __name__ == "__main__":
    key = jax.random.PRNGKey(0)
    pkey, xkey = jax.random.split(key)

    params = init_params(pkey)
    packed = pack_params(params)

    B = 64  # batch size (multiple of 8 for clean sublane layout)
    x = jax.random.normal(xkey, (B, 3), dtype=jnp.float32)

    out = jax.block_until_ready(binary_classification_forward(x, packed))
    assert out.shape == (B, 1) and out.dtype == jnp.float32

    # Pure-JAX reference of the same math (natural-shape params).
    # layer_1 / layer_out use HIGHEST precision because the kernel evaluates
    # those layers in exact f32 on the VPU; layer_2/3 use default precision to
    # mirror the kernel's MXU dots.
    def ref(x, p):
        (w1, b1, g1, be1, w2, b2, g2, be2, w3, b3, g3, be3, w4, b4) = p
        hp = jax.lax.Precision.HIGHEST

        def bn(h, g, be):
            mu = h.mean(0, keepdims=True)
            var = ((h - mu) ** 2).mean(0, keepdims=True)
            return (h - mu) / jnp.sqrt(var + BN_EPS) * g + be

        h = bn(jnp.maximum(jnp.dot(x, w1, precision=hp) + b1, 0.0), g1, be1)
        h = bn(jnp.maximum(jnp.dot(h, w2) + b2, 0.0), g2, be2)
        h = bn(jnp.maximum(jnp.dot(h, w3) + b3, 0.0), g3, be3)
        return jnp.dot(h, w4, precision=hp) + b4

    ref_out = ref(x, params)
    max_err = float(jnp.max(jnp.abs(out - ref_out)))
    # Tolerance covers MXU multi-pass vs XLA default-precision f32 differences.
    assert max_err < 5e-4, f"max abs err {max_err}"

    print("KERNEL_OK")
</pallas_src>

<mosaic_0001>
module attributes {stable_mosaic.version = 11 : i64} {
  func.func @_mlp_kernel(%arg0: memref<64x3xf32, #tpu.memory_space<vmem>>, %arg1: memref<3x128xf32, #tpu.memory_space<vmem>>, %arg2: memref<128x1024xf32, #tpu.memory_space<vmem>>, %arg3: memref<8x1024xf32, #tpu.memory_space<vmem>>, %arg4: memref<8x128xf32, #tpu.memory_space<vmem>>, %arg5: memref<3x1024xf32, #tpu.memory_space<vmem>>, %arg6: memref<64x1xf32, #tpu.memory_space<vmem>>) attributes {dimension_semantics = [], scalar_prefetch = 0 : i64, scratch_operands = 0 : i64, tpu.core_type = #tpu.core_type<tc>} {
    %c0 = arith.constant 0 : index
    %c0_0 = arith.constant 0 : index
    %0 = vector.load %arg0[%c0, %c0_0] : memref<64x3xf32, #tpu.memory_space<vmem>>, vector<64x3xf32>
    %c0_1 = arith.constant 0 : index
    %c0_2 = arith.constant 0 : index
    %1 = vector.load %arg1[%c0_1, %c0_2] : memref<3x128xf32, #tpu.memory_space<vmem>>, vector<3x128xf32>
    %c0_3 = arith.constant 0 : index
    %c0_4 = arith.constant 0 : index
    %2 = vector.load %arg4[%c0_3, %c0_4] : memref<8x128xf32, #tpu.memory_space<vmem>>, vector<8x128xf32>
    %c0_5 = arith.constant 0 : index
    %c0_6 = arith.constant 0 : index
    %3 = vector.load %arg5[%c0_5, %c0_6] : memref<3x1024xf32, #tpu.memory_space<vmem>>, vector<3x1024xf32>
    %4 = vector.extract_strided_slice %2 {offsets = [0, 0], sizes = [1, 128], strides = [1, 1]} : vector<8x128xf32> to vector<1x128xf32>
    %5 = vector.extract_strided_slice %2 {offsets = [1, 0], sizes = [1, 128], strides = [1, 1]} : vector<8x128xf32> to vector<1x128xf32>
    %6 = vector.extract_strided_slice %2 {offsets = [2, 0], sizes = [1, 128], strides = [1, 1]} : vector<8x128xf32> to vector<1x128xf32>
    %7 = vector.extract_strided_slice %2 {offsets = [3, 0], sizes = [1, 8], strides = [1, 1]} : vector<8x128xf32> to vector<1x8xf32>
    %8 = vector.extract_strided_slice %2 {offsets = [4, 0], sizes = [1, 8], strides = [1, 1]} : vector<8x128xf32> to vector<1x8xf32>
    %9 = vector.extract_strided_slice %2 {offsets = [5, 0], sizes = [1, 8], strides = [1, 1]} : vector<8x128xf32> to vector<1x8xf32>
    %10 = vector.extract_strided_slice %2 {offsets = [6, 0], sizes = [1, 8], strides = [1, 1]} : vector<8x128xf32> to vector<1x8xf32>
    %11 = vector.extract_strided_slice %2 {offsets = [7, 0], sizes = [1, 1], strides = [1, 1]} : vector<8x128xf32> to vector<1x1xf32>
    %12 = vector.extract_strided_slice %3 {offsets = [0, 0], sizes = [1, 1024], strides = [1, 1]} : vector<3x1024xf32> to vector<1x1024xf32>
    %13 = vector.extract_strided_slice %3 {offsets = [1, 0], sizes = [1, 1024], strides = [1, 1]} : vector<3x1024xf32> to vector<1x1024xf32>
    %14 = vector.extract_strided_slice %3 {offsets = [2, 0], sizes = [1, 1024], strides = [1, 1]} : vector<3x1024xf32> to vector<1x1024xf32>
    %15 = vector.extract_strided_slice %0 {offsets = [0, 0], sizes = [64, 1], strides = [1, 1]} : vector<64x3xf32> to vector<64x1xf32>
    %16 = vector.extract_strided_slice %1 {offsets = [0, 0], sizes = [1, 128], strides = [1, 1]} : vector<3x128xf32> to vector<1x128xf32>
    %17 = vector.broadcast %15 : vector<64x1xf32> to vector<64x128xf32>
    %18 = vector.broadcast %16 : vector<1x128xf32> to vector<64x128xf32>
    %19 = arith.mulf %17, %18 : vector<64x128xf32>
    %20 = vector.extract_strided_slice %0 {offsets = [0, 1], sizes = [64, 1], strides = [1, 1]} : vector<64x3xf32> to vector<64x1xf32>
    %21 = vector.extract_strided_slice %1 {offsets = [1, 0], sizes = [1, 128], strides = [1, 1]} : vector<3x128xf32> to vector<1x128xf32>
    %22 = vector.broadcast %20 : vector<64x1xf32> to vector<64x128xf32>
    %23 = vector.broadcast %21 : vector<1x128xf32> to vector<64x128xf32>
    %24 = arith.mulf %22, %23 : vector<64x128xf32>
    %25 = arith.addf %19, %24 : vector<64x128xf32>
    %26 = vector.extract_strided_slice %0 {offsets = [0, 2], sizes = [64, 1], strides = [1, 1]} : vector<64x3xf32> to vector<64x1xf32>
    %27 = vector.extract_strided_slice %1 {offsets = [2, 0], sizes = [1, 128], strides = [1, 1]} : vector<3x128xf32> to vector<1x128xf32>
    %28 = vector.broadcast %26 : vector<64x1xf32> to vector<64x128xf32>
    %29 = vector.broadcast %27 : vector<1x128xf32> to vector<64x128xf32>
    %30 = arith.mulf %28, %29 : vector<64x128xf32>
    %31 = arith.addf %25, %30 : vector<64x128xf32>
    %32 = vector.broadcast %4 : vector<1x128xf32> to vector<64x128xf32>
    %33 = arith.addf %31, %32 : vector<64x128xf32>
    %cst = arith.constant 0.000000e+00 : f32
    %34 = vector.broadcast %cst : f32 to vector<64x128xf32>
    %35 = arith.maximumf %33, %34 : vector<64x128xf32>
    %cst_7 = arith.constant dense<0.000000e+00> : vector<128xf32>
    %36 = vector.multi_reduction <add>, %35, %cst_7 [0] : vector<64x128xf32> to vector<128xf32>
    %37 = vector.shape_cast %36 : vector<128xf32> to vector<1x128xf32>
    %38 = arith.mulf %35, %35 : vector<64x128xf32>
    %cst_8 = arith.constant dense<0.000000e+00> : vector<128xf32>
    %39 = vector.multi_reduction <add>, %38, %cst_8 [0] : vector<64x128xf32> to vector<128xf32>
    %40 = vector.shape_cast %39 : vector<128xf32> to vector<1x128xf32>
    %cst_9 = arith.constant 1.562500e-02 : f32
    %41 = vector.broadcast %cst_9 : f32 to vector<1x128xf32>
    %42 = arith.mulf %37, %41 : vector<1x128xf32>
    %cst_10 = arith.constant 1.562500e-02 : f32
    %43 = vector.broadcast %cst_10 : f32 to vector<1x128xf32>
    %44 = arith.mulf %40, %43 : vector<1x128xf32>
    %45 = arith.mulf %42, %42 : vector<1x128xf32>
    %46 = arith.subf %44, %45 : vector<1x128xf32>
    %47 = vector.broadcast %42 : vector<1x128xf32> to vector<64x128xf32>
    %48 = arith.subf %35, %47 : vector<64x128xf32>
    %cst_11 = arith.constant 9.99999974E-6 : f32
    %49 = vector.broadcast %cst_11 : f32 to vector<1x128xf32>
    %50 = arith.addf %46, %49 : vector<1x128xf32>
    %51 = math.rsqrt %50 : vector<1x128xf32>
    %52 = vector.broadcast %51 : vector<1x128xf32> to vector<64x128xf32>
    %53 = arith.mulf %48, %52 : vector<64x128xf32>
    %54 = vector.broadcast %5 : vector<1x128xf32> to vector<64x128xf32>
    %55 = arith.mulf %53, %54 : vector<64x128xf32>
    %56 = vector.broadcast %6 : vector<1x128xf32> to vector<64x128xf32>
    %57 = arith.addf %55, %56 : vector<64x128xf32>
    %c0_12 = arith.constant 0 : index
    %c0_13 = arith.constant 0 : index
    %58 = vector.load %arg2[%c0_12, %c0_13] : memref<128x1024xf32, #tpu.memory_space<vmem>>, vector<128x1024xf32>
    %cst_14 = arith.constant dense<0.000000e+00> : vector<64x1024xf32>
    %59 = tpu.matmul %57, %58, %cst_14 {dimension_numbers = #tpu.dot_dimension_numbers<[1], [0], [0], [1], [0, 0, 1, 1], [], []>} : vector<64x128xf32>, vector<128x1024xf32>, vector<64x1024xf32> -> vector<64x1024xf32>
    %60 = vector.broadcast %12 : vector<1x1024xf32> to vector<64x1024xf32>
    %61 = arith.addf %59, %60 : vector<64x1024xf32>
    %cst_15 = arith.constant 0.000000e+00 : f32
    %62 = vector.broadcast %cst_15 : f32 to vector<64x1024xf32>
    %63 = arith.maximumf %61, %62 : vector<64x1024xf32>
    %cst_16 = arith.constant dense<0.000000e+00> : vector<1024xf32>
    %64 = vector.multi_reduction <add>, %63, %cst_16 [0] : vector<64x1024xf32> to vector<1024xf32>
    %65 = vector.shape_cast %64 : vector<1024xf32> to vector<1x1024xf32>
    %66 = arith.mulf %63, %63 : vector<64x1024xf32>
    %cst_17 = arith.constant dense<0.000000e+00> : vector<1024xf32>
    %67 = vector.multi_reduction <add>, %66, %cst_17 [0] : vector<64x1024xf32> to vector<1024xf32>
    %68 = vector.shape_cast %67 : vector<1024xf32> to vector<1x1024xf32>
    %cst_18 = arith.constant 1.562500e-02 : f32
    %69 = vector.broadcast %cst_18 : f32 to vector<1x1024xf32>
    %70 = arith.mulf %65, %69 : vector<1x1024xf32>
    %cst_19 = arith.constant 1.562500e-02 : f32
    %71 = vector.broadcast %cst_19 : f32 to vector<1x1024xf32>
    %72 = arith.mulf %68, %71 : vector<1x1024xf32>
    %73 = arith.mulf %70, %70 : vector<1x1024xf32>
    %74 = arith.subf %72, %73 : vector<1x1024xf32>
    %75 = vector.broadcast %70 : vector<1x1024xf32> to vector<64x1024xf32>
    %76 = arith.subf %63, %75 : vector<64x1024xf32>
    %cst_20 = arith.constant 9.99999974E-6 : f32
    %77 = vector.broadcast %cst_20 : f32 to vector<1x1024xf32>
    %78 = arith.addf %74, %77 : vector<1x1024xf32>
    %79 = math.rsqrt %78 : vector<1x1024xf32>
    %80 = vector.broadcast %79 : vector<1x1024xf32> to vector<64x1024xf32>
    %81 = arith.mulf %76, %80 : vector<64x1024xf32>
    %82 = vector.broadcast %13 : vector<1x1024xf32> to vector<64x1024xf32>
    %83 = arith.mulf %81, %82 : vector<64x1024xf32>
    %84 = vector.broadcast %14 : vector<1x1024xf32> to vector<64x1024xf32>
    %85 = arith.addf %83, %84 : vector<64x1024xf32>
    %c0_21 = arith.constant 0 : index
    %c0_22 = arith.constant 0 : index
    %86 = vector.load %arg3[%c0_21, %c0_22] : memref<8x1024xf32, #tpu.memory_space<vmem>>, vector<8x1024xf32>
    %cst_23 = arith.constant dense<0.000000e+00> : vector<64x8xf32>
    %87 = tpu.matmul %85, %86, %cst_23 {dimension_numbers = #tpu.dot_dimension_numbers<[1], [1], [0], [0], [0, 0, 1, 0], [], []>} : vector<64x1024xf32>, vector<8x1024xf32>, vector<64x8xf32> -> vector<64x8xf32>
    %88 = vector.broadcast %7 : vector<1x8xf32> to vector<64x8xf32>
    %89 = arith.addf %87, %88 : vector<64x8xf32>
    %cst_24 = arith.constant 0.000000e+00 : f32
    %90 = vector.broadcast %cst_24 : f32 to vector<64x8xf32>
    %91 = arith.maximumf %89, %90 : vector<64x8xf32>
    %cst_25 = arith.constant dense<0.000000e+00> : vector<8xf32>
    %92 = vector.multi_reduction <add>, %91, %cst_25 [0] : vector<64x8xf32> to vector<8xf32>
    %93 = vector.shape_cast %92 : vector<8xf32> to vector<1x8xf32>
    %94 = arith.mulf %91, %91 : vector<64x8xf32>
    %cst_26 = arith.constant dense<0.000000e+00> : vector<8xf32>
    %95 = vector.multi_reduction <add>, %94, %cst_26 [0] : vector<64x8xf32> to vector<8xf32>
    %96 = vector.shape_cast %95 : vector<8xf32> to vector<1x8xf32>
    %cst_27 = arith.constant 1.562500e-02 : f32
    %97 = vector.broadcast %cst_27 : f32 to vector<1x8xf32>
    %98 = arith.mulf %93, %97 : vector<1x8xf32>
    %cst_28 = arith.constant 1.562500e-02 : f32
    %99 = vector.broadcast %cst_28 : f32 to vector<1x8xf32>
    %100 = arith.mulf %96, %99 : vector<1x8xf32>
    %101 = arith.mulf %98, %98 : vector<1x8xf32>
    %102 = arith.subf %100, %101 : vector<1x8xf32>
    %103 = vector.broadcast %98 : vector<1x8xf32> to vector<64x8xf32>
    %104 = arith.subf %91, %103 : vector<64x8xf32>
    %cst_29 = arith.constant 9.99999974E-6 : f32
    %105 = vector.broadcast %cst_29 : f32 to vector<1x8xf32>
    %106 = arith.addf %102, %105 : vector<1x8xf32>
    %107 = math.rsqrt %106 : vector<1x8xf32>
    %108 = vector.broadcast %107 : vector<1x8xf32> to vector<64x8xf32>
    %109 = arith.mulf %104, %108 : vector<64x8xf32>
    %110 = vector.broadcast %8 : vector<1x8xf32> to vector<64x8xf32>
    %111 = arith.mulf %109, %110 : vector<64x8xf32>
    %112 = vector.broadcast %9 : vector<1x8xf32> to vector<64x8xf32>
    %113 = arith.addf %111, %112 : vector<64x8xf32>
    %114 = vector.broadcast %10 : vector<1x8xf32> to vector<64x8xf32>
    %115 = arith.mulf %113, %114 : vector<64x8xf32>
    %cst_30 = arith.constant dense<0.000000e+00> : vector<64xf32>
    %116 = vector.multi_reduction <add>, %115, %cst_30 [1] : vector<64x8xf32> to vector<64xf32>
    %117 = vector.shape_cast %116 : vector<64xf32> to vector<64x1xf32>
    %118 = vector.broadcast %11 : vector<1x1xf32> to vector<64x1xf32>
    %119 = arith.addf %117, %118 : vector<64x1xf32>
    %c0_31 = arith.constant 0 : index
    %c0_32 = arith.constant 0 : index
    %120 = vector.load %arg6[%c0_31, %c0_32] : memref<64x1xf32, #tpu.memory_space<vmem>>, vector<64x1xf32>
    tpu.vector_store %arg6[%c0_31, %c0_32], %119 {strides = array<i32>} : memref<64x1xf32, #tpu.memory_space<vmem>>, vector<64x1xf32>,
    return
  }
}

</mosaic_0001>

<llo_original>
// kernel: tpu_custom_call.1
$region0: #{tpu_custom_call.1}
  #allocation0 [shape = 'u32[]', space=smem, size = 0x4, offset = 0x4, fixed_abs, tag = 'smem constant byte address 0x4 - core index']
  #allocation1 [shape = 'u32[144,128]{1,0:T(1,128)}', space=vmem, size = 0x12000, scoped, tag = 'internal scratch']
  %s0 = inlined_call_operand.vmem [shape: f32[64,3], index: 0, kind: input, shape index: {}]
  %s1 = inlined_call_operand.hbm [shape: f32[3,128], index: 1, kind: input, shape index: {}]
  %s2 = inlined_call_operand.hbm [shape: f32[128,1024], index: 2, kind: input, shape index: {}]
  %s3 = inlined_call_operand.vmem [shape: f32[8,1024], index: 3, kind: input, shape index: {}]
  %s4 = inlined_call_operand.vmem [shape: f32[8,128], index: 4, kind: input, shape index: {}]
  %s5 = inlined_call_operand.hbm [shape: f32[3,1024], index: 5, kind: input, shape index: {}]
  %s6 = inlined_call_operand.vmem [shape: f32[64,1], index: 6, kind: output, shape index: {}]
  %s7 = sld [smem:[#allocation0]]
  $region46: #{tpu_custom_call.1} parent=0
    _
  %s9 = ssub.s32 1, %s7
  %s10 = scalar_select 0, %s9, %s7
  $region1: #{tpu_custom_call.1} parent=0
    #allocation2 [shape = 'u8[2048]{0}', space=vmem, size = 0x800, scoped, tag = 'input window, operand 1, single buffered']
    #allocation3 [shape = 's32[1]{0}', space=sflag, size = 0x4, scoped, tag = 'scoped memory for tpu_custom_call.1']
    #allocation4 [shape = 'u8[524288]{0}', space=vmem, size = 0x80000, scoped, tag = 'input window, operand 2, single buffered']
    #allocation5 [shape = 's32[1]{0}', space=sflag, size = 0x4, scoped, tag = 'scoped memory for tpu_custom_call.1']
    #allocation6 [shape = 'u8[16384]{0}', space=vmem, size = 0x4000, scoped, tag = 'input window, operand 5, single buffered']
    %11 = vsyncpa [#allocation3], 0
    %12 = vsyncpa [#allocation5], 0
    // Predicated region
    $region2: #{tpu_custom_call.1} parent=1 // pred_check
      _
    $region3: #{tpu_custom_call.1} parent=1 // pred_check_branch
      %14 = sbr.rel (0) target = $region5
    $region4: #{tpu_custom_call.1} parent=1 // pred_region
      _
    $region5: #{tpu_custom_call.1} parent=1 // pred_fallthru
      _
    // Predicated region
    $region6: #{tpu_custom_call.1} parent=1 // pred_check
      _
    $region7: #{tpu_custom_call.1} parent=1 // pred_check_branch
      %16 = sbr.rel (0) target = $region9
    $region8: #{tpu_custom_call.1} parent=1 // pred_region
      %s18 = ssub.s32 64, 64
      %19 = vsyncadd [#allocation3], %s18
      %s21 = sshll.u32 [#allocation2], 4
      %s22 = int_to_ptr.vmem [resolvable:$true] %s21
      %24 = dma.hbm_to_vmem [thread:$0]  %s1, 64, %s22, [#allocation3]
    $region9: #{tpu_custom_call.1} parent=1 // pred_fallthru
      _
    // Predicated region
    $region10: #{tpu_custom_call.1} parent=1 // pred_check
      _
    $region11: #{tpu_custom_call.1} parent=1 // pred_check_branch
      %26 = sbr.rel (0) target = $region13
    $region12: #{tpu_custom_call.1} parent=1 // pred_region
      %s28 = ssub.s32 16384, 16384
      %29 = vsyncadd [#allocation5], %s28
      %s30 = sshll.u32 [#allocation4], 4
      %s31 = int_to_ptr.vmem [resolvable:$true] %s30
      %36 = dma.hbm_to_vmem [thread:$0]  %s2, 16384, %s31, [#allocation5], 1024, 1024, 64
    $region13: #{tpu_custom_call.1} parent=1 // pred_fallthru
      _
    // Predicated region
    $region14: #{tpu_custom_call.1} parent=1 // pred_check
      _
    $region15: #{tpu_custom_call.1} parent=1 // pred_check_branch
      %38 = sbr.rel (0) target = $region17
    $region16: #{tpu_custom_call.1} parent=1 // pred_region
      _
    $region17: #{tpu_custom_call.1} parent=1 // pred_fallthru
      _
    // Predicated region
    $region18: #{tpu_custom_call.1} parent=1 // pred_check
      _
    $region19: #{tpu_custom_call.1} parent=1 // pred_check_branch
      %40 = sbr.rel (0) target = $region21
    $region20: #{tpu_custom_call.1} parent=1 // pred_region
      _
    $region21: #{tpu_custom_call.1} parent=1 // pred_fallthru
      _
    // Predicated region
    $region22: #{tpu_custom_call.1} parent=1 // pred_check
      _
    $region23: #{tpu_custom_call.1} parent=1 // pred_check_branch
      %42 = sbr.rel (0) target = $region25
    $region24: #{tpu_custom_call.1} parent=1 // pred_region
      %s44 = ssub.s32 512, 512
      %45 = vsyncadd [#allocation5], %s44
      %s47 = sshll.u32 [#allocation6], 4
      %s48 = int_to_ptr.vmem [resolvable:$true] %s47
      %50 = dma.hbm_to_vmem [thread:$0]  %s5, 512, %s48, [#allocation5]
    $region25: #{tpu_custom_call.1} parent=1 // pred_fallthru
      _
    // Predicated region
    $region26: #{tpu_custom_call.1} parent=1 // pred_check
      _
    $region27: #{tpu_custom_call.1} parent=1 // pred_check_branch
      %52 = sbr.rel (0) target = $region29
    $region28: #{tpu_custom_call.1} parent=1 // pred_region
      %53 = dma.done [#allocation3], 64
    $region29: #{tpu_custom_call.1} parent=1 // pred_fallthru
      _
    // Predicated region
    $region30: #{tpu_custom_call.1} parent=1 // pred_check
      _
    $region31: #{tpu_custom_call.1} parent=1 // pred_check_branch
      %55 = sbr.rel (0) target = $region33
    $region32: #{tpu_custom_call.1} parent=1 // pred_region
      %56 = dma.done [#allocation5], 16384
    $region33: #{tpu_custom_call.1} parent=1 // pred_fallthru
      _
    // Predicated region
    $region34: #{tpu_custom_call.1} parent=1 // pred_check
      _
    $region35: #{tpu_custom_call.1} parent=1 // pred_check_branch
      %58 = sbr.rel (0) target = $region37
    $region36: #{tpu_custom_call.1} parent=1 // pred_region
      %59 = dma.done [#allocation5], 512
    $region37: #{tpu_custom_call.1} parent=1 // pred_fallthru
      _
    %v60 = vld [vmem:[%s0] sm:$0xff]
    %v61 = vld [vmem:[%s0 + $0x8] sm:$0xff]
    %v62 = vld [vmem:[%s0 + $0x10] sm:$0xff]
    %v63 = vld [vmem:[%s0 + $0x18] sm:$0xff]
    %v64 = vld [vmem:[%s0 + $0x20] sm:$0xff]
    %v65 = vld [vmem:[%s0 + $0x28] sm:$0xff]
    %v66 = vld [vmem:[%s0 + $0x30] sm:$0xff]
    %v67 = vld [vmem:[%s0 + $0x38] sm:$0xff]
    %v68 = vld [vmem:[#allocation2] sm:$0x7]
    %v69 = vld [vmem:[%s4] sm:$0xff]
    %v70 = vld [vmem:[#allocation6] sm:$0x77]
    %v71 = vld [vmem:[#allocation6 + $0x8] sm:$0x77]
    %v72 = vld [vmem:[#allocation6 + $0x10] sm:$0x77]
    %v73 = vld [vmem:[#allocation6 + $0x18] sm:$0x77]
    %75 = vset.pattern.permute.xlu0 0
    %76 = vperm.xlu0 %75, %v60
    %v77 = vpop.permute.xlu0 %76
    %80 = vset.pattern.permute.xlu0 0
    %81 = vperm.xlu0 %80, %v61
    %v82 = vpop.permute.xlu0 %81
    %85 = vset.pattern.permute.xlu0 0
    %86 = vperm.xlu0 %85, %v62
    %v87 = vpop.permute.xlu0 %86
    %90 = vset.pattern.permute.xlu0 0
    %91 = vperm.xlu0 %90, %v63
    %v92 = vpop.permute.xlu0 %91
    %95 = vset.pattern.permute.xlu0 0
    %96 = vperm.xlu0 %95, %v64
    %v97 = vpop.permute.xlu0 %96
    %100 = vset.pattern.permute.xlu0 0
    %101 = vperm.xlu0 %100, %v65
    %v102 = vpop.permute.xlu0 %101
    %105 = vset.pattern.permute.xlu0 0
    %106 = vperm.xlu0 %105, %v66
    %v107 = vpop.permute.xlu0 %106
    %110 = vset.pattern.permute.xlu0 0
    %111 = vperm.xlu0 %110, %v67
    %v112 = vpop.permute.xlu0 %111
    %v114 = vlaneseq
    %v115 = vshrl.u32 %v114, 7
    %v116 = vsub.s32 0, %v115
    %v117 = vrot.slane %v68, %v116
    %v118 = vmul.f32 %v77, %v117
    %v119 = vmul.f32 %v82, %v117
    %v120 = vmul.f32 %v87, %v117
    %v121 = vmul.f32 %v92, %v117
    %v122 = vmul.f32 %v97, %v117
    %v123 = vmul.f32 %v102, %v117
    %v124 = vmul.f32 %v107, %v117
    %v125 = vmul.f32 %v112, %v117
    %126 = vset.pattern.permute.xlu0 1
    %127 = vperm.xlu0 %126, %v60
    %v128 = vpop.permute.xlu0 %127
    %130 = vset.pattern.permute.xlu0 1
    %131 = vperm.xlu0 %130, %v61
    %v132 = vpop.permute.xlu0 %131
    %134 = vset.pattern.permute.xlu0 1
    %135 = vperm.xlu0 %134, %v62
    %v136 = vpop.permute.xlu0 %135
    %138 = vset.pattern.permute.xlu0 1
    %139 = vperm.xlu0 %138, %v63
    %v140 = vpop.permute.xlu0 %139
    %142 = vset.pattern.permute.xlu0 1
    %143 = vperm.xlu0 %142, %v64
    %v144 = vpop.permute.xlu0 %143
    %146 = vset.pattern.permute.xlu0 1
    %147 = vperm.xlu0 %146, %v65
    %v148 = vpop.permute.xlu0 %147
    %150 = vset.pattern.permute.xlu0 1
    %151 = vperm.xlu0 %150, %v66
    %v152 = vpop.permute.xlu0 %151
    %154 = vset.pattern.permute.xlu0 1
    %155 = vperm.xlu0 %154, %v67
    %v156 = vpop.permute.xlu0 %155
    %v158 = vlaneseq
    %v159 = vshrl.u32 %v158, 7
    %v160 = vsub.s32 1, %v159
    %v161 = vrot.slane %v68, %v160
    %v162 = vmul.f32 %v128, %v161
    %v163 = vmul.f32 %v132, %v161
    %v164 = vmul.f32 %v136, %v161
    %v165 = vmul.f32 %v140, %v161
    %v166 = vmul.f32 %v144, %v161
    %v167 = vmul.f32 %v148, %v161
    %v168 = vmul.f32 %v152, %v161
    %v169 = vmul.f32 %v156, %v161
    %v170 = vadd.f32 %v118, %v162
    %v171 = vadd.f32 %v119, %v163
    %v172 = vadd.f32 %v120, %v164
    %v173 = vadd.f32 %v121, %v165
    %v174 = vadd.f32 %v122, %v166
    %v175 = vadd.f32 %v123, %v167
    %v176 = vadd.f32 %v124, %v168
    %v177 = vadd.f32 %v125, %v169
    %178 = vset.pattern.permute.xlu0 2
    %179 = vperm.xlu0 %178, %v60
    %v180 = vpop.permute.xlu0 %179
    %182 = vset.pattern.permute.xlu0 2
    %183 = vperm.xlu0 %182, %v61
    %v184 = vpop.permute.xlu0 %183
    %186 = vset.pattern.permute.xlu0 2
    %187 = vperm.xlu0 %186, %v62
    %v188 = vpop.permute.xlu0 %187
    %190 = vset.pattern.permute.xlu0 2
    %191 = vperm.xlu0 %190, %v63
    %v192 = vpop.permute.xlu0 %191
    %194 = vset.pattern.permute.xlu0 2
    %195 = vperm.xlu0 %194, %v64
    %v196 = vpop.permute.xlu0 %195
    %198 = vset.pattern.permute.xlu0 2
    %199 = vperm.xlu0 %198, %v65
    %v200 = vpop.permute.xlu0 %199
    %202 = vset.pattern.permute.xlu0 2
    %203 = vperm.xlu0 %202, %v66
    %v204 = vpop.permute.xlu0 %203
    %206 = vset.pattern.permute.xlu0 2
    %207 = vperm.xlu0 %206, %v67
    %v208 = vpop.permute.xlu0 %207
    %v210 = vlaneseq
    %v211 = vshrl.u32 %v210, 7
    %v212 = vsub.s32 2, %v211
    %v213 = vrot.slane %v68, %v212
    %v214 = vmul.f32 %v180, %v213
    %v215 = vmul.f32 %v184, %v213
    %v216 = vmul.f32 %v188, %v213
    %v217 = vmul.f32 %v192, %v213
    %v218 = vmul.f32 %v196, %v213
    %v219 = vmul.f32 %v200, %v213
    %v220 = vmul.f32 %v204, %v213
    %v221 = vmul.f32 %v208, %v213
    %v222 = vadd.f32 %v170, %v214
    %v223 = vadd.f32 %v171, %v215
    %v224 = vadd.f32 %v172, %v216
    %v225 = vadd.f32 %v173, %v217
    %v226 = vadd.f32 %v174, %v218
    %v227 = vadd.f32 %v175, %v219
    %v228 = vadd.f32 %v176, %v220
    %v229 = vadd.f32 %v177, %v221
    %v230 = vlaneseq
    %v231 = vshrl.u32 %v230, 7
    %v232 = vsub.s32 0, %v231
    %v233 = vrot.slane %v69, %v232
    %v234 = vadd.f32 %v222, %v233
    %v235 = vadd.f32 %v223, %v233
    %v236 = vadd.f32 %v224, %v233
    %v237 = vadd.f32 %v225, %v233
    %v238 = vadd.f32 %v226, %v233
    %v239 = vadd.f32 %v227, %v233
    %v240 = vadd.f32 %v228, %v233
    %v241 = vadd.f32 %v229, %v233
    %v242 = vmax.f32 %v234, 0.0
    %v243 = vmax.f32 %v235, 0.0
    %v244 = vmax.f32 %v236, 0.0
    %v245 = vmax.f32 %v237, 0.0
    %v246 = vmax.f32 %v238, 0.0
    %v247 = vmax.f32 %v239, 0.0
    %v248 = vmax.f32 %v240, 0.0
    %v249 = vmax.f32 %v241, 0.0
    %v250 = vadd.f32 %v242, %v243
    %v251 = vadd.f32 %v250, %v244
    %v252 = vadd.f32 %v251, %v245
    %v253 = vadd.f32 %v252, %v246
    %v254 = vadd.f32 %v253, %v247
    %v255 = vadd.f32 %v254, %v248
    %v256 = vadd.f32 %v255, %v249
    %v257 = vrot.slane %v256, 4
    %v258 = vadd.f32 %v256, %v257
    %v259 = vrot.slane %v258, 2
    %v260 = vadd.f32 %v258, %v259
    %v261 = vrot.slane %v260, 1
    %v262 = vadd.f32 %v260, %v261
    %v263 = vmul.f32 %v242, %v242
    %v264 = vmul.f32 %v243, %v243
    %v265 = vmul.f32 %v244, %v244
    %v266 = vmul.f32 %v245, %v245
    %v267 = vmul.f32 %v246, %v246
    %v268 = vmul.f32 %v247, %v247
    %v269 = vmul.f32 %v248, %v248
    %v270 = vmul.f32 %v249, %v249
    %v271 = vadd.f32 %v263, %v264
    %v272 = vadd.f32 %v271, %v265
    %v273 = vadd.f32 %v272, %v266
    %v274 = vadd.f32 %v273, %v267
    %v275 = vadd.f32 %v274, %v268
    %v276 = vadd.f32 %v275, %v269
    %v277 = vadd.f32 %v276, %v270
    %v278 = vrot.slane %v277, 4
    %v279 = vadd.f32 %v277, %v278
    %v280 = vrot.slane %v279, 2
    %v281 = vadd.f32 %v279, %v280
    %v282 = vrot.slane %v281, 1
    %v283 = vadd.f32 %v281, %v282
    %v284 = vmul.f32 %v262, 0.015625
    %v285 = vmul.f32 %v283, 0.015625
    %v286 = vmul.f32 %v284, %v284
    %v287 = vsub.f32 %v285, %v286
    %v288 = vsub.f32 %v242, %v284
    %v289 = vsub.f32 %v243, %v284
    %v290 = vsub.f32 %v244, %v284
    %v291 = vsub.f32 %v245, %v284
    %v292 = vsub.f32 %v246, %v284
    %v293 = vsub.f32 %v247, %v284
    %v294 = vsub.f32 %v248, %v284
    %v295 = vsub.f32 %v249, %v284
    %v296 = vadd.f32 %v287, 1e-05
    %v297 = vrsqrt.pop %v296
    %v298 = vmul.f32 %v288, %v297
    %v299 = vmul.f32 %v289, %v297
    %v300 = vmul.f32 %v290, %v297
    %v301 = vmul.f32 %v291, %v297
    %v302 = vmul.f32 %v292, %v297
    %v303 = vmul.f32 %v293, %v297
    %v304 = vmul.f32 %v294, %v297
    %v305 = vmul.f32 %v295, %v297
    %v306 = vlaneseq
    %v307 = vshrl.u32 %v306, 7
    %v308 = vsub.s32 1, %v307
    %v309 = vrot.slane %v69, %v308
    %v310 = vmul.f32 %v298, %v309
    %v311 = vmul.f32 %v299, %v309
    %v312 = vmul.f32 %v300, %v309
    %v313 = vmul.f32 %v301, %v309
    %v314 = vmul.f32 %v302, %v309
    %v315 = vmul.f32 %v303, %v309
    %v316 = vmul.f32 %v304, %v309
    %v317 = vmul.f32 %v305, %v309
    %v318 = vlaneseq
    %v319 = vshrl.u32 %v318, 7
    %v320 = vsub.s32 2, %v319
    %v321 = vrot.slane %v69, %v320
    %v322 = vadd.f32 %v310, %v321
    %v323 = vadd.f32 %v311, %v321
    %v324 = vadd.f32 %v312, %v321
    %v325 = vadd.f32 %v313, %v321
    %v326 = vadd.f32 %v314, %v321
    %v327 = vadd.f32 %v315, %v321
    %v328 = vadd.f32 %v316, %v321
    %v329 = vadd.f32 %v317, %v321
    %v330 = vld [vmem:[#allocation4] sm:$0xff]
    %v331 = vld [vmem:[#allocation4 + $0x8] sm:$0xff]
    %v332 = vld [vmem:[#allocation4 + $0x10] sm:$0xff]
    %v333 = vld [vmem:[#allocation4 + $0x18] sm:$0xff]
    %v334 = vld [vmem:[#allocation4 + $0x20] sm:$0xff]
    %v335 = vld [vmem:[#allocation4 + $0x28] sm:$0xff]
    %v336 = vld [vmem:[#allocation4 + $0x30] sm:$0xff]
    %v337 = vld [vmem:[#allocation4 + $0x38] sm:$0xff]
    %v338 = vld [vmem:[#allocation4 + $0x40] sm:$0xff]
    %v339 = vld [vmem:[#allocation4 + $0x48] sm:$0xff]
    %v340 = vld [vmem:[#allocation4 + $0x50] sm:$0xff]
    %v341 = vld [vmem:[#allocation4 + $0x58] sm:$0xff]
    %v342 = vld [vmem:[#allocation4 + $0x60] sm:$0xff]
    %v343 = vld [vmem:[#allocation4 + $0x68] sm:$0xff]
    %v344 = vld [vmem:[#allocation4 + $0x70] sm:$0xff]
    %v345 = vld [vmem:[#allocation4 + $0x78] sm:$0xff]
    %v346 = vld [vmem:[#allocation4 + $0x80] sm:$0xff]
    %v347 = vld [vmem:[#allocation4 + $0x88] sm:$0xff]
    %v348 = vld [vmem:[#allocation4 + $0x90] sm:$0xff]
    %v349 = vld [vmem:[#allocation4 + $0x98] sm:$0xff]
    %v350 = vld [vmem:[#allocation4 + $0xa0] sm:$0xff]
    %v351 = vld [vmem:[#allocation4 + $0xa8] sm:$0xff]
    %v352 = vld [vmem:[#allocation4 + $0xb0] sm:$0xff]
    %v353 = vld [vmem:[#allocation4 + $0xb8] sm:$0xff]
    %v354 = vld [vmem:[#allocation4 + $0xc0] sm:$0xff]
    %v355 = vld [vmem:[#allocation4 + $0xc8] sm:$0xff]
    %v356 = vld [vmem:[#allocation4 + $0xd0] sm:$0xff]
    %v357 = vld [vmem:[#allocation4 + $0xd8] sm:$0xff]
    %v358 = vld [vmem:[#allocation4 + $0xe0] sm:$0xff]
    %v359 = vld [vmem:[#allocation4 + $0xe8] sm:$0xff]
    %v360 = vld [vmem:[#allocation4 + $0xf0] sm:$0xff]
    %v361 = vld [vmem:[#allocation4 + $0xf8] sm:$0xff]
    %v362 = vld [vmem:[#allocation4 + $0x100] sm:$0xff]
    %v363 = vld [vmem:[#allocation4 + $0x108] sm:$0xff]
    %v364 = vld [vmem:[#allocation4 + $0x110] sm:$0xff]
    %v365 = vld [vmem:[#allocation4 + $0x118] sm:$0xff]
    %v366 = vld [vmem:[#allocation4 + $0x120] sm:$0xff]
    %v367 = vld [vmem:[#allocation4 + $0x128] sm:$0xff]
    %v368 = vld [vmem:[#allocation4 + $0x130] sm:$0xff]
    %v369 = vld [vmem:[#allocation4 + $0x138] sm:$0xff]
    %v370 = vld [vmem:[#allocation4 + $0x140] sm:$0xff]
    %v371 = vld [vmem:[#allocation4 + $0x148] sm:$0xff]
    %v372 = vld [vmem:[#allocation4 + $0x150] sm:$0xff]
    %v373 = vld [vmem:[#allocation4 + $0x158] sm:$0xff]
    %v374 = vld [vmem:[#allocation4 + $0x160] sm:$0xff]
    %v375 = vld [vmem:[#allocation4 + $0x168] sm:$0xff]
    %v376 = vld [vmem:[#allocation4 + $0x170] sm:$0xff]
    %v377 = vld [vmem:[#allocation4 + $0x178] sm:$0xff]
    %v378 = vld [vmem:[#allocation4 + $0x180] sm:$0xff]
    %v379 = vld [vmem:[#allocation4 + $0x188] sm:$0xff]
    %v380 = vld [vmem:[#allocation4 + $0x190] sm:$0xff]
    %v381 = vld [vmem:[#allocation4 + $0x198] sm:$0xff]
    %v382 = vld [vmem:[#allocation4 + $0x1a0] sm:$0xff]
    %v383 = vld [vmem:[#allocation4 + $0x1a8] sm:$0xff]
    %v384 = vld [vmem:[#allocation4 + $0x1b0] sm:$0xff]
    %v385 = vld [vmem:[#allocation4 + $0x1b8] sm:$0xff]
    %v386 = vld [vmem:[#allocation4 + $0x1c0] sm:$0xff]
    %v387 = vld [vmem:[#allocation4 + $0x1c8] sm:$0xff]
    %v388 = vld [vmem:[#allocation4 + $0x1d0] sm:$0xff]
    %v389 = vld [vmem:[#allocation4 + $0x1d8] sm:$0xff]
    %v390 = vld [vmem:[#allocation4 + $0x1e0] sm:$0xff]
    %v391 = vld [vmem:[#allocation4 + $0x1e8] sm:$0xff]
    %v392 = vld [vmem:[#allocation4 + $0x1f0] sm:$0xff]
    %v393 = vld [vmem:[#allocation4 + $0x1f8] sm:$0xff]
    %v394 = vld [vmem:[#allocation4 + $0x200] sm:$0xff]
    %v395 = vld [vmem:[#allocation4 + $0x208] sm:$0xff]
    %v396 = vld [vmem:[#allocation4 + $0x210] sm:$0xff]
    %v397 = vld [vmem:[#allocation4 + $0x218] sm:$0xff]
    %v398 = vld [vmem:[#allocation4 + $0x220] sm:$0xff]
    %v399 = vld [vmem:[#allocation4 + $0x228] sm:$0xff]
    %v400 = vld [vmem:[#allocation4 + $0x230] sm:$0xff]
    %v401 = vld [vmem:[#allocation4 + $0x238] sm:$0xff]
    %v402 = vld [vmem:[#allocation4 + $0x240] sm:$0xff]
    %v403 = vld [vmem:[#allocation4 + $0x248] sm:$0xff]
    %v404 = vld [vmem:[#allocation4 + $0x250] sm:$0xff]
    %v405 = vld [vmem:[#allocation4 + $0x258] sm:$0xff]
    %v406 = vld [vmem:[#allocation4 + $0x260] sm:$0xff]
    %v407 = vld [vmem:[#allocation4 + $0x268] sm:$0xff]
    %v408 = vld [vmem:[#allocation4 + $0x270] sm:$0xff]
    %v409 = vld [vmem:[#allocation4 + $0x278] sm:$0xff]
    %v410 = vld [vmem:[#allocation4 + $0x280] sm:$0xff]
    %v411 = vld [vmem:[#allocation4 + $0x288] sm:$0xff]
    %v412 = vld [vmem:[#allocation4 + $0x290] sm:$0xff]
    %v413 = vld [vmem:[#allocation4 + $0x298] sm:$0xff]
    %v414 = vld [vmem:[#allocation4 + $0x2a0] sm:$0xff]
    %v415 = vld [vmem:[#allocation4 + $0x2a8] sm:$0xff]
    %v416 = vld [vmem:[#allocation4 + $0x2b0] sm:$0xff]
    %v417 = vld [vmem:[#allocation4 + $0x2b8] sm:$0xff]
    %v418 = vld [vmem:[#allocation4 + $0x2c0] sm:$0xff]
    %v419 = vld [vmem:[#allocation4 + $0x2c8] sm:$0xff]
    %v420 = vld [vmem:[#allocation4 + $0x2d0] sm:$0xff]
    %v421 = vld [vmem:[#allocation4 + $0x2d8] sm:$0xff]
    %v422 = vld [vmem:[#allocation4 + $0x2e0] sm:$0xff]
    %v423 = vld [vmem:[#allocation4 + $0x2e8] sm:$0xff]
    %v424 = vld [vmem:[#allocation4 + $0x2f0] sm:$0xff]
    %v425 = vld [vmem:[#allocation4 + $0x2f8] sm:$0xff]
    %v426 = vld [vmem:[#allocation4 + $0x300] sm:$0xff]
    %v427 = vld [vmem:[#allocation4 + $0x308] sm:$0xff]
    %v428 = vld [vmem:[#allocation4 + $0x310] sm:$0xff]
    %v429 = vld [vmem:[#allocation4 + $0x318] sm:$0xff]
    %v430 = vld [vmem:[#allocation4 + $0x320] sm:$0xff]
    %v431 = vld [vmem:[#allocation4 + $0x328] sm:$0xff]
    %v432 = vld [vmem:[#allocation4 + $0x330] sm:$0xff]
    %v433 = vld [vmem:[#allocation4 + $0x338] sm:$0xff]
    %v434 = vld [vmem:[#allocation4 + $0x340] sm:$0xff]
    %v435 = vld [vmem:[#allocation4 + $0x348] sm:$0xff]
    %v436 = vld [vmem:[#allocation4 + $0x350] sm:$0xff]
    %v437 = vld [vmem:[#allocation4 + $0x358] sm:$0xff]
    %v438 = vld [vmem:[#allocation4 + $0x360] sm:$0xff]
    %v439 = vld [vmem:[#allocation4 + $0x368] sm:$0xff]
    %v440 = vld [vmem:[#allocation4 + $0x370] sm:$0xff]
    %v441 = vld [vmem:[#allocation4 + $0x378] sm:$0xff]
    %v442 = vld [vmem:[#allocation4 + $0x380] sm:$0xff]
    %v443 = vld [vmem:[#allocation4 + $0x388] sm:$0xff]
    %v444 = vld [vmem:[#allocation4 + $0x390] sm:$0xff]
    %v445 = vld [vmem:[#allocation4 + $0x398] sm:$0xff]
    %v446 = vld [vmem:[#allocation4 + $0x3a0] sm:$0xff]
    %v447 = vld [vmem:[#allocation4 + $0x3a8] sm:$0xff]
    %v448 = vld [vmem:[#allocation4 + $0x3b0] sm:$0xff]
    %v449 = vld [vmem:[#allocation4 + $0x3b8] sm:$0xff]
    %v450 = vld [vmem:[#allocation4 + $0x3c0] sm:$0xff]
    %v451 = vld [vmem:[#allocation4 + $0x3c8] sm:$0xff]
    %v452 = vld [vmem:[#allocation4 + $0x3d0] sm:$0xff]
    %v453 = vld [vmem:[#allocation4 + $0x3d8] sm:$0xff]
    %v454 = vld [vmem:[#allocation4 + $0x3e0] sm:$0xff]
    %v455 = vld [vmem:[#allocation4 + $0x3e8] sm:$0xff]
    %v456 = vld [vmem:[#allocation4 + $0x3f0] sm:$0xff]
    %v457 = vld [vmem:[#allocation4 + $0x3f8] sm:$0xff]
    %v462 = vlaneseq
    %v463 = vshrl.u32 %v462, 7
    %v464 = vsub.s32 0, %v463
    %v465 = vrot.slane %v70, %v464
    %v466 = vlaneseq
    %v467 = vshrl.u32 %v466, 7
    %v468 = vsub.s32 4, %v467
    %v469 = vrot.slane %v70, %v468
    %v470 = vlaneseq
    %v471 = vshrl.u32 %v470, 7
    %v472 = vsub.s32 0, %v471
    %v473 = vrot.slane %v71, %v472
    %v474 = vlaneseq
    %v475 = vshrl.u32 %v474, 7
    %v476 = vsub.s32 4, %v475
    %v477 = vrot.slane %v71, %v476
    %v478 = vlaneseq
    %v479 = vshrl.u32 %v478, 7
    %v480 = vsub.s32 0, %v479
    %v481 = vrot.slane %v72, %v480
    %v482 = vlaneseq
    %v483 = vshrl.u32 %v482, 7
    %v484 = vsub.s32 4, %v483
    %v485 = vrot.slane %v72, %v484
    %v486 = vlaneseq
    %v487 = vshrl.u32 %v486, 7
    %v488 = vsub.s32 0, %v487
    %v489 = vrot.slane %v73, %v488
    %v490 = vlaneseq
    %v491 = vshrl.u32 %v490, 7
    %v492 = vsub.s32 4, %v491
    %v493 = vrot.slane %v73, %v492
    %v502 = vlaneseq
    %v503 = vshrl.u32 %v502, 7
    %v504 = vsub.s32 0, %v503
    %v505 = vrot.slane %v465, %v504
    %v506 = vlaneseq
    %v507 = vshrl.u32 %v506, 7
    %v508 = vsub.s32 0, %v507
    %v509 = vrot.slane %v469, %v508
    %v510 = vlaneseq
    %v511 = vshrl.u32 %v510, 7
    %v512 = vsub.s32 0, %v511
    %v513 = vrot.slane %v473, %v512
    %v514 = vlaneseq
    %v515 = vshrl.u32 %v514, 7
    %v516 = vsub.s32 0, %v515
    %v517 = vrot.slane %v477, %v516
    %v518 = vlaneseq
    %v519 = vshrl.u32 %v518, 7
    %v520 = vsub.s32 0, %v519
    %v521 = vrot.slane %v481, %v520
    %v522 = vlaneseq
    %v523 = vshrl.u32 %v522, 7
    %v524 = vsub.s32 0, %v523
    %v525 = vrot.slane %v485, %v524
    %v526 = vlaneseq
    %v527 = vshrl.u32 %v526, 7
    %v528 = vsub.s32 0, %v527
    %v529 = vrot.slane %v489, %v528
    %v530 = vlaneseq
    %v531 = vshrl.u32 %v530, 7
    %v532 = vsub.s32 0, %v531
    %v533 = vrot.slane %v493, %v532
    %534 = vmatprep.subr.mxu0 %v451
    %535 = vmatpush1.msra.mxu0 %v450
    %536 = vmatprep.subr.mxu0 %v443
    %537 = vmatpush1.msra.mxu0 %v442
    %538 = vmatprep.subr.mxu0 %v435
    %539 = vmatpush1.msra.mxu0 %v434
    %540 = vmatprep.subr.mxu0 %v427
    %541 = vmatpush1.msra.mxu0 %v426
    %542 = vmatprep.subr.mxu0 %v419
    %543 = vmatpush1.msra.mxu0 %v418
    %544 = vmatprep.subr.mxu0 %v411
    %545 = vmatpush1.msra.mxu0 %v410
    %546 = vmatprep.subr.mxu0 %v403
    %547 = vmatpush1.msra.mxu0 %v402
    %548 = vmatprep.subr.mxu0 %v395
    %549 = vmatpush1.msra.mxu0 %v394
    %550 = vmatprep.subr.mxu0 %v387
    %551 = vmatpush1.msra.mxu0 %v386
    %552 = vmatprep.subr.mxu0 %v379
    %553 = vmatpush1.msra.mxu0 %v378
    %554 = vmatprep.subr.mxu0 %v371
    %555 = vmatpush1.msra.mxu0 %v370
    %556 = vmatprep.subr.mxu0 %v363
    %557 = vmatpush1.msra.mxu0 %v362
    %558 = vmatprep.subr.mxu0 %v355
    %559 = vmatpush1.msra.mxu0 %v354
    %560 = vmatprep.subr.mxu0 %v347
    %561 = vmatpush1.msra.mxu0 %v346
    %562 = vmatprep.subr.mxu0 %v339
    %563 = vmatpush1.msra.mxu0 %v338
    %564 = vmatprep.subr.mxu0 %v331
    %565 = vmatpush1.msra.mxu0 %v330
    %566 = vmatprep.subr.mxu0 0.0
    %567 = vmatpush2.msra.mxu0 0.0
    %568 = vmatprep.subr.mxu0 0.0
    %569 = vmatpush2.msra.mxu0 0.0
    %570 = vmatprep.subr.mxu0 0.0
    %571 = vmatpush2.msra.mxu0 0.0
    %572 = vmatprep.subr.mxu0 0.0
    %573 = vmatpush2.msra.mxu0 0.0
    %574 = vmatprep.subr.mxu0 0.0
    %575 = vmatpush2.msra.mxu0 0.0
    %576 = vmatprep.subr.mxu0 0.0
    %577 = vmatpush2.msra.mxu0 0.0
    %578 = vmatprep.subr.mxu0 0.0
    %579 = vmatpush2.msra.mxu0 0.0
    %580 = vmatprep.subr.mxu0 0.0
    %581 = vmatpush2.msra.mxu0 0.0
    %582 = vmatprep.subr.mxu0 0.0
    %583 = vmatpush2.msra.mxu0 0.0
    %584 = vmatprep.subr.mxu0 0.0
    %585 = vmatpush2.msra.mxu0 0.0
    %586 = vmatprep.subr.mxu0 0.0
    %587 = vmatpush2.msra.mxu0 0.0
    %588 = vmatprep.subr.mxu0 0.0
    %589 = vmatpush2.msra.mxu0 0.0
    %590 = vmatprep.subr.mxu0 0.0
    %591 = vmatpush2.msra.mxu0 0.0
    %592 = vmatprep.subr.mxu0 0.0
    %593 = vmatpush2.msra.mxu0 0.0
    %594 = vmatprep.subr.mxu0 0.0
    %595 = vmatpush2.msra.mxu0 0.0
    %596 = vmatprep.subr.mxu0 0.0
    %597 = vmatpush2.msra.mxu0 0.0
    %598 = vmatprep.mubr.f32.mxu0 0.0
    %599 = vmatmul.mubr.f32.gmra.mxu0 %v322
    %v600 = vpop.f32.mrf.mxu0
    %v601 = vadd.f32 %v505, %v600
    %v602 = vpop.f32.mrf.mxu0
    %v603 = vadd.f32 %v509, %v602
    %604 = vmatprep.mubr.f32.mxu0 0.0
    %605 = vmatmul.mubr.f32.gmra.mxu0 %v323
    %v606 = vpop.f32.mrf.mxu0
    %v607 = vadd.f32 %v505, %v606
    %v608 = vpop.f32.mrf.mxu0
    %v609 = vadd.f32 %v509, %v608
    %610 = vmatprep.mubr.f32.mxu0 0.0
    %611 = vmatmul.mubr.f32.gmra.mxu0 %v324
    %v612 = vpop.f32.mrf.mxu0
    %v613 = vadd.f32 %v505, %v612
    %v614 = vpop.f32.mrf.mxu0
    %v615 = vadd.f32 %v509, %v614
    %616 = vmatprep.mubr.f32.mxu0 0.0
    %617 = vmatmul.mubr.f32.gmra.mxu0 %v325
    %v618 = vpop.f32.mrf.mxu0
    %v619 = vadd.f32 %v505, %v618
    %v620 = vpop.f32.mrf.mxu0
    %v621 = vadd.f32 %v509, %v620
    %622 = vmatprep.mubr.f32.mxu0 0.0
    %623 = vmatmul.mubr.f32.gmra.mxu0 %v326
    %v624 = vpop.f32.mrf.mxu0
    %v625 = vadd.f32 %v505, %v624
    %v626 = vpop.f32.mrf.mxu0
    %v627 = vadd.f32 %v509, %v626
    %628 = vmatprep.mubr.f32.mxu0 0.0
    %629 = vmatmul.mubr.f32.gmra.mxu0 %v327
    %v630 = vpop.f32.mrf.mxu0
    %v631 = vadd.f32 %v505, %v630
    %v632 = vpop.f32.mrf.mxu0
    %v633 = vadd.f32 %v509, %v632
    %634 = vmatprep.mubr.f32.mxu0 0.0
    %635 = vmatmul.mubr.f32.gmra.mxu0 %v328
    %v636 = vpop.f32.mrf.mxu0
    %v637 = vadd.f32 %v505, %v636
    %v638 = vpop.f32.mrf.mxu0
    %v639 = vadd.f32 %v509, %v638
    %640 = vmatprep.mubr.f32.mxu0 0.0
    %641 = vmatmul.mubr.f32.gmra.mxu0 %v329
    %v642 = vpop.f32.mrf.mxu0
    %v643 = vadd.f32 %v505, %v642
    %v644 = vpop.f32.mrf.mxu0
    %v645 = vadd.f32 %v509, %v644
    %646 = vdwg.mxu0
    %647 = vmatprep.subr.mxu0 %v453
    %648 = vmatpush1.msra.mxu0 %v452
    %649 = vmatprep.subr.mxu0 %v445
    %650 = vmatpush1.msra.mxu0 %v444
    %651 = vmatprep.subr.mxu0 %v437
    %652 = vmatpush1.msra.mxu0 %v436
    %653 = vmatprep.subr.mxu0 %v429
    %654 = vmatpush1.msra.mxu0 %v428
    %655 = vmatprep.subr.mxu0 %v421
    %656 = vmatpush1.msra.mxu0 %v420
    %657 = vmatprep.subr.mxu0 %v413
    %658 = vmatpush1.msra.mxu0 %v412
    %659 = vmatprep.subr.mxu0 %v405
    %660 = vmatpush1.msra.mxu0 %v404
    %661 = vmatprep.subr.mxu0 %v397
    %662 = vmatpush1.msra.mxu0 %v396
    %663 = vmatprep.subr.mxu0 %v389
    %664 = vmatpush1.msra.mxu0 %v388
    %665 = vmatprep.subr.mxu0 %v381
    %666 = vmatpush1.msra.mxu0 %v380
    %667 = vmatprep.subr.mxu0 %v373
    %668 = vmatpush1.msra.mxu0 %v372
    %669 = vmatprep.subr.mxu0 %v365
    %670 = vmatpush1.msra.mxu0 %v364
    %671 = vmatprep.subr.mxu0 %v357
    %672 = vmatpush1.msra.mxu0 %v356
    %673 = vmatprep.subr.mxu0 %v349
    %674 = vmatpush1.msra.mxu0 %v348
    %675 = vmatprep.subr.mxu0 %v341
    %676 = vmatpush1.msra.mxu0 %v340
    %677 = vmatprep.subr.mxu0 %v333
    %678 = vmatpush1.msra.mxu0 %v332
    %679 = vmatprep.subr.mxu0 0.0
    %680 = vmatpush2.msra.mxu0 0.0
    %681 = vmatprep.subr.mxu0 0.0
    %682 = vmatpush2.msra.mxu0 0.0
    %683 = vmatprep.subr.mxu0 0.0
    %684 = vmatpush2.msra.mxu0 0.0
    %685 = vmatprep.subr.mxu0 0.0
    %686 = vmatpush2.msra.mxu0 0.0
    %687 = vmatprep.subr.mxu0 0.0
    %688 = vmatpush2.msra.mxu0 0.0
    %689 = vmatprep.subr.mxu0 0.0
    %690 = vmatpush2.msra.mxu0 0.0
    %691 = vmatprep.subr.mxu0 0.0
    %692 = vmatpush2.msra.mxu0 0.0
    %693 = vmatprep.subr.mxu0 0.0
    %694 = vmatpush2.msra.mxu0 0.0
    %695 = vmatprep.subr.mxu0 0.0
    %696 = vmatpush2.msra.mxu0 0.0
    %697 = vmatprep.subr.mxu0 0.0
    %698 = vmatpush2.msra.mxu0 0.0
    %699 = vmatprep.subr.mxu0 0.0
    %700 = vmatpush2.msra.mxu0 0.0
    %701 = vmatprep.subr.mxu0 0.0
    %702 = vmatpush2.msra.mxu0 0.0
    %703 = vmatprep.subr.mxu0 0.0
    %704 = vmatpush2.msra.mxu0 0.0
    %705 = vmatprep.subr.mxu0 0.0
    %706 = vmatpush2.msra.mxu0 0.0
    %707 = vmatprep.subr.mxu0 0.0
    %708 = vmatpush2.msra.mxu0 0.0
    %709 = vmatprep.subr.mxu0 0.0
    %710 = vmatpush2.msra.mxu0 0.0
    %711 = vmatprep.mubr.f32.mxu0 0.0
    %712 = vmatmul.mubr.f32.gmra.mxu0 %v322
    %v713 = vpop.f32.mrf.mxu0
    %v714 = vadd.f32 %v513, %v713
    %v715 = vpop.f32.mrf.mxu0
    %v716 = vadd.f32 %v517, %v715
    %717 = vmatprep.mubr.f32.mxu0 0.0
    %718 = vmatmul.mubr.f32.gmra.mxu0 %v323
    %v719 = vpop.f32.mrf.mxu0
    %v720 = vadd.f32 %v513, %v719
    %v721 = vpop.f32.mrf.mxu0
    %v722 = vadd.f32 %v517, %v721
    %723 = vmatprep.mubr.f32.mxu0 0.0
    %724 = vmatmul.mubr.f32.gmra.mxu0 %v324
    %v725 = vpop.f32.mrf.mxu0
    %v726 = vadd.f32 %v513, %v725
    %v727 = vpop.f32.mrf.mxu0
    %v728 = vadd.f32 %v517, %v727
    %729 = vmatprep.mubr.f32.mxu0 0.0
    %730 = vmatmul.mubr.f32.gmra.mxu0 %v325
    %v731 = vpop.f32.mrf.mxu0
    %v732 = vadd.f32 %v513, %v731
    %v733 = vpop.f32.mrf.mxu0
    %v734 = vadd.f32 %v517, %v733
    %735 = vmatprep.mubr.f32.mxu0 0.0
    %736 = vmatmul.mubr.f32.gmra.mxu0 %v326
    %v737 = vpop.f32.mrf.mxu0
    %v738 = vadd.f32 %v513, %v737
    %v739 = vpop.f32.mrf.mxu0
    %v740 = vadd.f32 %v517, %v739
    %741 = vmatprep.mubr.f32.mxu0 0.0
    %742 = vmatmul.mubr.f32.gmra.mxu0 %v327
    %v743 = vpop.f32.mrf.mxu0
    %v744 = vadd.f32 %v513, %v743
    %v745 = vpop.f32.mrf.mxu0
    %v746 = vadd.f32 %v517, %v745
    %747 = vmatprep.mubr.f32.mxu0 0.0
    %748 = vmatmul.mubr.f32.gmra.mxu0 %v328
    %v749 = vpop.f32.mrf.mxu0
    %v750 = vadd.f32 %v513, %v749
    %v751 = vpop.f32.mrf.mxu0
    %v752 = vadd.f32 %v517, %v751
    %753 = vmatprep.mubr.f32.mxu0 0.0
    %754 = vmatmul.mubr.f32.gmra.mxu0 %v329
    %v755 = vpop.f32.mrf.mxu0
    %v756 = vadd.f32 %v513, %v755
    %v757 = vpop.f32.mrf.mxu0
    %v758 = vadd.f32 %v517, %v757
    %759 = vdwg.mxu0
    %760 = vmatprep.subr.mxu0 %v455
    %761 = vmatpush1.msra.mxu0 %v454
    %762 = vmatprep.subr.mxu0 %v447
    %763 = vmatpush1.msra.mxu0 %v446
    %764 = vmatprep.subr.mxu0 %v439
    %765 = vmatpush1.msra.mxu0 %v438
    %766 = vmatprep.subr.mxu0 %v431
    %767 = vmatpush1.msra.mxu0 %v430
    %768 = vmatprep.subr.mxu0 %v423
    %769 = vmatpush1.msra.mxu0 %v422
    %770 = vmatprep.subr.mxu0 %v415
    %771 = vmatpush1.msra.mxu0 %v414
    %772 = vmatprep.subr.mxu0 %v407
    %773 = vmatpush1.msra.mxu0 %v406
    %774 = vmatprep.subr.mxu0 %v399
    %775 = vmatpush1.msra.mxu0 %v398
    %776 = vmatprep.subr.mxu0 %v391
    %777 = vmatpush1.msra.mxu0 %v390
    %778 = vmatprep.subr.mxu0 %v383
    %779 = vmatpush1.msra.mxu0 %v382
    %780 = vmatprep.subr.mxu0 %v375
    %781 = vmatpush1.msra.mxu0 %v374
    %782 = vmatprep.subr.mxu0 %v367
    %783 = vmatpush1.msra.mxu0 %v366
    %784 = vmatprep.subr.mxu0 %v359
    %785 = vmatpush1.msra.mxu0 %v358
    %786 = vmatprep.subr.mxu0 %v351
    %787 = vmatpush1.msra.mxu0 %v350
    %788 = vmatprep.subr.mxu0 %v343
    %789 = vmatpush1.msra.mxu0 %v342
    %790 = vmatprep.subr.mxu0 %v335
    %791 = vmatpush1.msra.mxu0 %v334
    %792 = vmatprep.subr.mxu0 0.0
    %793 = vmatpush2.msra.mxu0 0.0
    %794 = vmatprep.subr.mxu0 0.0
    %795 = vmatpush2.msra.mxu0 0.0
    %796 = vmatprep.subr.mxu0 0.0
    %797 = vmatpush2.msra.mxu0 0.0
    %798 = vmatprep.subr.mxu0 0.0
    %799 = vmatpush2.msra.mxu0 0.0
    %800 = vmatprep.subr.mxu0 0.0
    %801 = vmatpush2.msra.mxu0 0.0
    %802 = vmatprep.subr.mxu0 0.0
    %803 = vmatpush2.msra.mxu0 0.0
    %804 = vmatprep.subr.mxu0 0.0
    %805 = vmatpush2.msra.mxu0 0.0
    %806 = vmatprep.subr.mxu0 0.0
    %807 = vmatpush2.msra.mxu0 0.0
    %808 = vmatprep.subr.mxu0 0.0
    %809 = vmatpush2.msra.mxu0 0.0
    %810 = vmatprep.subr.mxu0 0.0
    %811 = vmatpush2.msra.mxu0 0.0
    %812 = vmatprep.subr.mxu0 0.0
    %813 = vmatpush2.msra.mxu0 0.0
    %814 = vmatprep.subr.mxu0 0.0
    %815 = vmatpush2.msra.mxu0 0.0
    %816 = vmatprep.subr.mxu0 0.0
    %817 = vmatpush2.msra.mxu0 0.0
    %818 = vmatprep.subr.mxu0 0.0
    %819 = vmatpush2.msra.mxu0 0.0
    %820 = vmatprep.subr.mxu0 0.0
    %821 = vmatpush2.msra.mxu0 0.0
    %822 = vmatprep.subr.mxu0 0.0
    %823 = vmatpush2.msra.mxu0 0.0
    %824 = vmatprep.mubr.f32.mxu0 0.0
    %825 = vmatmul.mubr.f32.gmra.mxu0 %v322
    %v826 = vpop.f32.mrf.mxu0
    %v827 = vadd.f32 %v521, %v826
    %v828 = vpop.f32.mrf.mxu0
    %v829 = vadd.f32 %v525, %v828
    %830 = vmatprep.mubr.f32.mxu0 0.0
    %831 = vmatmul.mubr.f32.gmra.mxu0 %v323
    %v832 = vpop.f32.mrf.mxu0
    %v833 = vadd.f32 %v521, %v832
    %v834 = vpop.f32.mrf.mxu0
    %v835 = vadd.f32 %v525, %v834
    %836 = vmatprep.mubr.f32.mxu0 0.0
    %837 = vmatmul.mubr.f32.gmra.mxu0 %v324
    %v838 = vpop.f32.mrf.mxu0
    %v839 = vadd.f32 %v521, %v838
    %v840 = vpop.f32.mrf.mxu0
    %v841 = vadd.f32 %v525, %v840
    %842 = vmatprep.mubr.f32.mxu0 0.0
    %843 = vmatmul.mubr.f32.gmra.mxu0 %v325
    %v844 = vpop.f32.mrf.mxu0
    %v845 = vadd.f32 %v521, %v844
    %v846 = vpop.f32.mrf.mxu0
    %v847 = vadd.f32 %v525, %v846
    %848 = vmatprep.mubr.f32.mxu0 0.0
    %849 = vmatmul.mubr.f32.gmra.mxu0 %v326
    %v850 = vpop.f32.mrf.mxu0
    %v851 = vadd.f32 %v521, %v850
    %v852 = vpop.f32.mrf.mxu0
    %v853 = vadd.f32 %v525, %v852
    %854 = vmatprep.mubr.f32.mxu0 0.0
    %855 = vmatmul.mubr.f32.gmra.mxu0 %v327
    %v856 = vpop.f32.mrf.mxu0
    %v857 = vadd.f32 %v521, %v856
    %v858 = vpop.f32.mrf.mxu0
    %v859 = vadd.f32 %v525, %v858
    %860 = vmatprep.mubr.f32.mxu0 0.0
    %861 = vmatmul.mubr.f32.gmra.mxu0 %v328
    %v862 = vpop.f32.mrf.mxu0
    %v863 = vadd.f32 %v521, %v862
    %v864 = vpop.f32.mrf.mxu0
    %v865 = vadd.f32 %v525, %v864
    %866 = vmatprep.mubr.f32.mxu0 0.0
    %867 = vmatmul.mubr.f32.gmra.mxu0 %v329
    %v868 = vpop.f32.mrf.mxu0
    %v869 = vadd.f32 %v521, %v868
    %v870 = vpop.f32.mrf.mxu0
    %v871 = vadd.f32 %v525, %v870
    %872 = vdwg.mxu0
    %873 = vmatprep.subr.mxu0 %v457
    %874 = vmatpush1.msra.mxu0 %v456
    %875 = vmatprep.subr.mxu0 %v449
    %876 = vmatpush1.msra.mxu0 %v448
    %877 = vmatprep.subr.mxu0 %v441
    %878 = vmatpush1.msra.mxu0 %v440
    %879 = vmatprep.subr.mxu0 %v433
    %880 = vmatpush1.msra.mxu0 %v432
    %881 = vmatprep.subr.mxu0 %v425
    %882 = vmatpush1.msra.mxu0 %v424
    %883 = vmatprep.subr.mxu0 %v417
    %884 = vmatpush1.msra.mxu0 %v416
    %885 = vmatprep.subr.mxu0 %v409
    %886 = vmatpush1.msra.mxu0 %v408
    %887 = vmatprep.subr.mxu0 %v401
    %888 = vmatpush1.msra.mxu0 %v400
    %889 = vmatprep.subr.mxu0 %v393
    %890 = vmatpush1.msra.mxu0 %v392
    %891 = vmatprep.subr.mxu0 %v385
    %892 = vmatpush1.msra.mxu0 %v384
    %893 = vmatprep.subr.mxu0 %v377
    %894 = vmatpush1.msra.mxu0 %v376
    %895 = vmatprep.subr.mxu0 %v369
    %896 = vmatpush1.msra.mxu0 %v368
    %897 = vmatprep.subr.mxu0 %v361
    %898 = vmatpush1.msra.mxu0 %v360
    %899 = vmatprep.subr.mxu0 %v353
    %900 = vmatpush1.msra.mxu0 %v352
    %901 = vmatprep.subr.mxu0 %v345
    %902 = vmatpush1.msra.mxu0 %v344
    %903 = vmatprep.subr.mxu0 %v337
    %904 = vmatpush1.msra.mxu0 %v336
    %905 = vmatprep.subr.mxu0 0.0
    %906 = vmatpush2.msra.mxu0 0.0
    %907 = vmatprep.subr.mxu0 0.0
    %908 = vmatpush2.msra.mxu0 0.0
    %909 = vmatprep.subr.mxu0 0.0
    %910 = vmatpush2.msra.mxu0 0.0
    %911 = vmatprep.subr.mxu0 0.0
    %912 = vmatpush2.msra.mxu0 0.0
    %913 = vmatprep.subr.mxu0 0.0
    %914 = vmatpush2.msra.mxu0 0.0
    %915 = vmatprep.subr.mxu0 0.0
    %916 = vmatpush2.msra.mxu0 0.0
    %917 = vmatprep.subr.mxu0 0.0
    %918 = vmatpush2.msra.mxu0 0.0
    %919 = vmatprep.subr.mxu0 0.0
    %920 = vmatpush2.msra.mxu0 0.0
    %921 = vmatprep.subr.mxu0 0.0
    %922 = vmatpush2.msra.mxu0 0.0
    %923 = vmatprep.subr.mxu0 0.0
    %924 = vmatpush2.msra.mxu0 0.0
    %925 = vmatprep.subr.mxu0 0.0
    %926 = vmatpush2.msra.mxu0 0.0
    %927 = vmatprep.subr.mxu0 0.0
    %928 = vmatpush2.msra.mxu0 0.0
    %929 = vmatprep.subr.mxu0 0.0
    %930 = vmatpush2.msra.mxu0 0.0
    %931 = vmatprep.subr.mxu0 0.0
    %932 = vmatpush2.msra.mxu0 0.0
    %933 = vmatprep.subr.mxu0 0.0
    %934 = vmatpush2.msra.mxu0 0.0
    %935 = vmatprep.subr.mxu0 0.0
    %936 = vmatpush2.msra.mxu0 0.0
    %937 = vmatprep.mubr.f32.mxu0 0.0
    %938 = vmatmul.mubr.f32.gmra.mxu0 %v322
    %v939 = vpop.f32.mrf.mxu0
    %v940 = vadd.f32 %v529, %v939
    %v941 = vpop.f32.mrf.mxu0
    %v942 = vadd.f32 %v533, %v941
    %943 = vmatprep.mubr.f32.mxu0 0.0
    %944 = vmatmul.mubr.f32.gmra.mxu0 %v323
    %v945 = vpop.f32.mrf.mxu0
    %v946 = vadd.f32 %v529, %v945
    %v947 = vpop.f32.mrf.mxu0
    %v948 = vadd.f32 %v533, %v947
    %949 = vmatprep.mubr.f32.mxu0 0.0
    %950 = vmatmul.mubr.f32.gmra.mxu0 %v324
    %v951 = vpop.f32.mrf.mxu0
    %v952 = vadd.f32 %v529, %v951
    %v953 = vpop.f32.mrf.mxu0
    %v954 = vadd.f32 %v533, %v953
    %955 = vmatprep.mubr.f32.mxu0 0.0
    %956 = vmatmul.mubr.f32.gmra.mxu0 %v325
    %v957 = vpop.f32.mrf.mxu0
    %v958 = vadd.f32 %v529, %v957
    %v959 = vpop.f32.mrf.mxu0
    %v960 = vadd.f32 %v533, %v959
    %961 = vmatprep.mubr.f32.mxu0 0.0
    %962 = vmatmul.mubr.f32.gmra.mxu0 %v326
    %v963 = vpop.f32.mrf.mxu0
    %v964 = vadd.f32 %v529, %v963
    %v965 = vpop.f32.mrf.mxu0
    %v966 = vadd.f32 %v533, %v965
    %967 = vmatprep.mubr.f32.mxu0 0.0
    %968 = vmatmul.mubr.f32.gmra.mxu0 %v327
    %v969 = vpop.f32.mrf.mxu0
    %v970 = vadd.f32 %v529, %v969
    %v971 = vpop.f32.mrf.mxu0
    %v972 = vadd.f32 %v533, %v971
    %973 = vmatprep.mubr.f32.mxu0 0.0
    %974 = vmatmul.mubr.f32.gmra.mxu0 %v328
    %v975 = vpop.f32.mrf.mxu0
    %v976 = vadd.f32 %v529, %v975
    %v977 = vpop.f32.mrf.mxu0
    %v978 = vadd.f32 %v533, %v977
    %979 = vmatprep.mubr.f32.mxu0 0.0
    %980 = vmatmul.mubr.f32.gmra.mxu0 %v329
    %v981 = vpop.f32.mrf.mxu0
    %v982 = vadd.f32 %v529, %v981
    %v983 = vpop.f32.mrf.mxu0
    %v984 = vadd.f32 %v533, %v983
    %985 = vdwg.mxu0
    %v986 = vmax.f32 %v601, 0.0
    %v987 = vmax.f32 %v603, 0.0
    %v988 = vmax.f32 %v714, 0.0
    %v989 = vmax.f32 %v716, 0.0
    %v990 = vmax.f32 %v827, 0.0
    %v991 = vmax.f32 %v829, 0.0
    %v992 = vmax.f32 %v940, 0.0
    %v993 = vmax.f32 %v942, 0.0
    %v994 = vmax.f32 %v607, 0.0
    %v995 = vmax.f32 %v609, 0.0
    %v996 = vmax.f32 %v720, 0.0
    %v997 = vmax.f32 %v722, 0.0
    %v998 = vmax.f32 %v833, 0.0
    %v999 = vmax.f32 %v835, 0.0
    %v1000 = vmax.f32 %v946, 0.0
    %v1001 = vmax.f32 %v948, 0.0
    %v1002 = vmax.f32 %v613, 0.0
    %v1003 = vmax.f32 %v615, 0.0
    %v1004 = vmax.f32 %v726, 0.0
    %v1005 = vmax.f32 %v728, 0.0
    %v1006 = vmax.f32 %v839, 0.0
    %v1007 = vmax.f32 %v841, 0.0
    %v1008 = vmax.f32 %v952, 0.0
    %v1009 = vmax.f32 %v954, 0.0
    %v1010 = vmax.f32 %v619, 0.0
    %v1011 = vmax.f32 %v621, 0.0
    %v1012 = vmax.f32 %v732, 0.0
    %v1013 = vmax.f32 %v734, 0.0
    %v1014 = vmax.f32 %v845, 0.0
    %v1015 = vmax.f32 %v847, 0.0
    %v1016 = vmax.f32 %v958, 0.0
    %v1017 = vmax.f32 %v960, 0.0
    %v1018 = vmax.f32 %v625, 0.0
    %v1019 = vmax.f32 %v627, 0.0
    %v1020 = vmax.f32 %v738, 0.0
    %v1021 = vmax.f32 %v740, 0.0
    %v1022 = vmax.f32 %v851, 0.0
    %v1023 = vmax.f32 %v853, 0.0
    %v1024 = vmax.f32 %v964, 0.0
    %v1025 = vmax.f32 %v966, 0.0
    %v1026 = vmax.f32 %v631, 0.0
    %v1027 = vmax.f32 %v633, 0.0
    %v1028 = vmax.f32 %v744, 0.0
    %v1029 = vmax.f32 %v746, 0.0
    %v1030 = vmax.f32 %v857, 0.0
    %v1031 = vmax.f32 %v859, 0.0
    %v1032 = vmax.f32 %v970, 0.0
    %v1033 = vmax.f32 %v972, 0.0
    %v1034 = vmax.f32 %v637, 0.0
    %v1035 = vmax.f32 %v639, 0.0
    %v1036 = vmax.f32 %v750, 0.0
    %v1037 = vmax.f32 %v752, 0.0
    %v1038 = vmax.f32 %v863, 0.0
    %v1039 = vmax.f32 %v865, 0.0
    %v1040 = vmax.f32 %v976, 0.0
    %v1041 = vmax.f32 %v978, 0.0
    %v1042 = vmax.f32 %v643, 0.0
    %v1043 = vmax.f32 %v645, 0.0
    %v1044 = vmax.f32 %v756, 0.0
    %v1045 = vmax.f32 %v758, 0.0
    %v1046 = vmax.f32 %v869, 0.0
    %v1047 = vmax.f32 %v871, 0.0
    %v1048 = vmax.f32 %v982, 0.0
    %v1049 = vmax.f32 %v984, 0.0
    %v1050 = vadd.f32 %v986, %v994
    %v1051 = vadd.f32 %v1050, %v1002
    %v1052 = vadd.f32 %v1051, %v1010
    %v1053 = vadd.f32 %v1052, %v1018
    %v1054 = vadd.f32 %v1053, %v1026
    %v1055 = vadd.f32 %v1054, %v1034
    %v1056 = vadd.f32 %v1055, %v1042
    %v1057 = vrot.slane %v1056, 4
    %v1058 = vadd.f32 %v1056, %v1057
    %v1059 = vrot.slane %v1058, 2
    %v1060 = vadd.f32 %v1058, %v1059
    %v1061 = vrot.slane %v1060, 1
    %v1062 = vadd.f32 %v1060, %v1061
    %v1063 = vadd.f32 %v987, %v995
    %v1064 = vadd.f32 %v1063, %v1003
    %v1065 = vadd.f32 %v1064, %v1011
    %v1066 = vadd.f32 %v1065, %v1019
    %v1067 = vadd.f32 %v1066, %v1027
    %v1068 = vadd.f32 %v1067, %v1035
    %v1069 = vadd.f32 %v1068, %v1043
    %v1070 = vrot.slane %v1069, 4
    %v1071 = vadd.f32 %v1069, %v1070
    %v1072 = vrot.slane %v1071, 2
    %v1073 = vadd.f32 %v1071, %v1072
    %v1074 = vrot.slane %v1073, 1
    %v1075 = vadd.f32 %v1073, %v1074
    %v1076 = vadd.f32 %v988, %v996
    %v1077 = vadd.f32 %v1076, %v1004
    %v1078 = vadd.f32 %v1077, %v1012
    %v1079 = vadd.f32 %v1078, %v1020
    %v1080 = vadd.f32 %v1079, %v1028
    %v1081 = vadd.f32 %v1080, %v1036
    %v1082 = vadd.f32 %v1081, %v1044
    %v1083 = vrot.slane %v1082, 4
    %v1084 = vadd.f32 %v1082, %v1083
    %v1085 = vrot.slane %v1084, 2
    %v1086 = vadd.f32 %v1084, %v1085
    %v1087 = vrot.slane %v1086, 1
    %v1088 = vadd.f32 %v1086, %v1087
    %v1089 = vadd.f32 %v989, %v997
    %v1090 = vadd.f32 %v1089, %v1005
    %v1091 = vadd.f32 %v1090, %v1013
    %v1092 = vadd.f32 %v1091, %v1021
    %v1093 = vadd.f32 %v1092, %v1029
    %v1094 = vadd.f32 %v1093, %v1037
    %v1095 = vadd.f32 %v1094, %v1045
    %v1096 = vrot.slane %v1095, 4
    %v1097 = vadd.f32 %v1095, %v1096
    %v1098 = vrot.slane %v1097, 2
    %v1099 = vadd.f32 %v1097, %v1098
    %v1100 = vrot.slane %v1099, 1
    %v1101 = vadd.f32 %v1099, %v1100
    %v1102 = vadd.f32 %v990, %v998
    %v1103 = vadd.f32 %v1102, %v1006
    %v1104 = vadd.f32 %v1103, %v1014
    %v1105 = vadd.f32 %v1104, %v1022
    %v1106 = vadd.f32 %v1105, %v1030
    %v1107 = vadd.f32 %v1106, %v1038
    %v1108 = vadd.f32 %v1107, %v1046
    %v1109 = vrot.slane %v1108, 4
    %v1110 = vadd.f32 %v1108, %v1109
    %v1111 = vrot.slane %v1110, 2
    %v1112 = vadd.f32 %v1110, %v1111
    %v1113 = vrot.slane %v1112, 1
    %v1114 = vadd.f32 %v1112, %v1113
    %v1115 = vadd.f32 %v991, %v999
    %v1116 = vadd.f32 %v1115, %v1007
    %v1117 = vadd.f32 %v1116, %v1015
    %v1118 = vadd.f32 %v1117, %v1023
    %v1119 = vadd.f32 %v1118, %v1031
    %v1120 = vadd.f32 %v1119, %v1039
    %v1121 = vadd.f32 %v1120, %v1047
    %v1122 = vrot.slane %v1121, 4
    %v1123 = vadd.f32 %v1121, %v1122
    %v1124 = vrot.slane %v1123, 2
    %v1125 = vadd.f32 %v1123, %v1124
    %v1126 = vrot.slane %v1125, 1
    %v1127 = vadd.f32 %v1125, %v1126
    %v1128 = vadd.f32 %v992, %v1000
    %v1129 = vadd.f32 %v1128, %v1008
    %v1130 = vadd.f32 %v1129, %v1016
    %v1131 = vadd.f32 %v1130, %v1024
    %v1132 = vadd.f32 %v1131, %v1032
    %v1133 = vadd.f32 %v1132, %v1040
    %v1134 = vadd.f32 %v1133, %v1048
    %v1135 = vrot.slane %v1134, 4
    %v1136 = vadd.f32 %v1134, %v1135
    %v1137 = vrot.slane %v1136, 2
    %v1138 = vadd.f32 %v1136, %v1137
    %v1139 = vrot.slane %v1138, 1
    %v1140 = vadd.f32 %v1138, %v1139
    %v1141 = vadd.f32 %v993, %v1001
    %v1142 = vadd.f32 %v1141, %v1009
    %v1143 = vadd.f32 %v1142, %v1017
    %v1144 = vadd.f32 %v1143, %v1025
    %v1145 = vadd.f32 %v1144, %v1033
    %v1146 = vadd.f32 %v1145, %v1041
    %v1147 = vadd.f32 %v1146, %v1049
    %v1148 = vrot.slane %v1147, 4
    %v1149 = vadd.f32 %v1147, %v1148
    %v1150 = vrot.slane %v1149, 2
    %v1151 = vadd.f32 %v1149, %v1150
    %v1152 = vrot.slane %v1151, 1
    %v1153 = vadd.f32 %v1151, %v1152
    %v1154 = vmul.f32 %v986, %v986
    %v1155 = vmul.f32 %v987, %v987
    %v1156 = vmul.f32 %v988, %v988
    %v1157 = vmul.f32 %v989, %v989
    %v1158 = vmul.f32 %v990, %v990
    %v1159 = vmul.f32 %v991, %v991
    %v1160 = vmul.f32 %v992, %v992
    %v1161 = vmul.f32 %v993, %v993
    %v1162 = vmul.f32 %v994, %v994
    %v1163 = vmul.f32 %v995, %v995
    %v1164 = vmul.f32 %v996, %v996
    %v1165 = vmul.f32 %v997, %v997
    %v1166 = vmul.f32 %v998, %v998
    %v1167 = vmul.f32 %v999, %v999
    %v1168 = vmul.f32 %v1000, %v1000
    %v1169 = vmul.f32 %v1001, %v1001
    %v1170 = vmul.f32 %v1002, %v1002
    %v1171 = vmul.f32 %v1003, %v1003
    %v1172 = vmul.f32 %v1004, %v1004
    %v1173 = vmul.f32 %v1005, %v1005
    %v1174 = vmul.f32 %v1006, %v1006
    %v1175 = vmul.f32 %v1007, %v1007
    %v1176 = vmul.f32 %v1008, %v1008
    %v1177 = vmul.f32 %v1009, %v1009
    %v1178 = vmul.f32 %v1010, %v1010
    %v1179 = vmul.f32 %v1011, %v1011
    %v1180 = vmul.f32 %v1012, %v1012
    %v1181 = vmul.f32 %v1013, %v1013
    %v1182 = vmul.f32 %v1014, %v1014
    %v1183 = vmul.f32 %v1015, %v1015
    %v1184 = vmul.f32 %v1016, %v1016
    %v1185 = vmul.f32 %v1017, %v1017
    %v1186 = vmul.f32 %v1018, %v1018
    %v1187 = vmul.f32 %v1019, %v1019
    %v1188 = vmul.f32 %v1020, %v1020
    %v1189 = vmul.f32 %v1021, %v1021
    %v1190 = vmul.f32 %v1022, %v1022
    %v1191 = vmul.f32 %v1023, %v1023
    %v1192 = vmul.f32 %v1024, %v1024
    %v1193 = vmul.f32 %v1025, %v1025
    %v1194 = vmul.f32 %v1026, %v1026
    %v1195 = vmul.f32 %v1027, %v1027
    %v1196 = vmul.f32 %v1028, %v1028
    %v1197 = vmul.f32 %v1029, %v1029
    %v1198 = vmul.f32 %v1030, %v1030
    %v1199 = vmul.f32 %v1031, %v1031
    %v1200 = vmul.f32 %v1032, %v1032
    %v1201 = vmul.f32 %v1033, %v1033
    %v1202 = vmul.f32 %v1034, %v1034
    %v1203 = vmul.f32 %v1035, %v1035
    %v1204 = vmul.f32 %v1036, %v1036
    %v1205 = vmul.f32 %v1037, %v1037
    %v1206 = vmul.f32 %v1038, %v1038
    %v1207 = vmul.f32 %v1039, %v1039
    %v1208 = vmul.f32 %v1040, %v1040
    %v1209 = vmul.f32 %v1041, %v1041
    %v1210 = vmul.f32 %v1042, %v1042
    %v1211 = vmul.f32 %v1043, %v1043
    %v1212 = vmul.f32 %v1044, %v1044
    %v1213 = vmul.f32 %v1045, %v1045
    %v1214 = vmul.f32 %v1046, %v1046
    %v1215 = vmul.f32 %v1047, %v1047
    %v1216 = vmul.f32 %v1048, %v1048
    %v1217 = vmul.f32 %v1049, %v1049
    %v1218 = vadd.f32 %v1154, %v1162
    %v1219 = vadd.f32 %v1218, %v1170
    %v1220 = vadd.f32 %v1219, %v1178
    %v1221 = vadd.f32 %v1220, %v1186
    %v1222 = vadd.f32 %v1221, %v1194
    %v1223 = vadd.f32 %v1222, %v1202
    %v1224 = vadd.f32 %v1223, %v1210
    %v1225 = vrot.slane %v1224, 4
    %v1226 = vadd.f32 %v1224, %v1225
    %v1227 = vrot.slane %v1226, 2
    %v1228 = vadd.f32 %v1226, %v1227
    %v1229 = vrot.slane %v1228, 1
    %v1230 = vadd.f32 %v1228, %v1229
    %v1231 = vadd.f32 %v1155, %v1163
    %v1232 = vadd.f32 %v1231, %v1171
    %v1233 = vadd.f32 %v1232, %v1179
    %v1234 = vadd.f32 %v1233, %v1187
    %v1235 = vadd.f32 %v1234, %v1195
    %v1236 = vadd.f32 %v1235, %v1203
    %v1237 = vadd.f32 %v1236, %v1211
    %v1238 = vrot.slane %v1237, 4
    %v1239 = vadd.f32 %v1237, %v1238
    %v1240 = vrot.slane %v1239, 2
    %v1241 = vadd.f32 %v1239, %v1240
    %v1242 = vrot.slane %v1241, 1
    %v1243 = vadd.f32 %v1241, %v1242
    %v1244 = vadd.f32 %v1156, %v1164
    %v1245 = vadd.f32 %v1244, %v1172
    %v1246 = vadd.f32 %v1245, %v1180
    %v1247 = vadd.f32 %v1246, %v1188
    %v1248 = vadd.f32 %v1247, %v1196
    %v1249 = vadd.f32 %v1248, %v1204
    %v1250 = vadd.f32 %v1249, %v1212
    %v1251 = vrot.slane %v1250, 4
    %v1252 = vadd.f32 %v1250, %v1251
    %v1253 = vrot.slane %v1252, 2
    %v1254 = vadd.f32 %v1252, %v1253
    %v1255 = vrot.slane %v1254, 1
    %v1256 = vadd.f32 %v1254, %v1255
    %v1257 = vadd.f32 %v1157, %v1165
    %v1258 = vadd.f32 %v1257, %v1173
    %v1259 = vadd.f32 %v1258, %v1181
    %v1260 = vadd.f32 %v1259, %v1189
    %v1261 = vadd.f32 %v1260, %v1197
    %v1262 = vadd.f32 %v1261, %v1205
    %v1263 = vadd.f32 %v1262, %v1213
    %v1264 = vrot.slane %v1263, 4
    %v1265 = vadd.f32 %v1263, %v1264
    %v1266 = vrot.slane %v1265, 2
    %v1267 = vadd.f32 %v1265, %v1266
    %v1268 = vrot.slane %v1267, 1
    %v1269 = vadd.f32 %v1267, %v1268
    %v1270 = vadd.f32 %v1158, %v1166
    %v1271 = vadd.f32 %v1270, %v1174
    %v1272 = vadd.f32 %v1271, %v1182
    %v1273 = vadd.f32 %v1272, %v1190
    %v1274 = vadd.f32 %v1273, %v1198
    %v1275 = vadd.f32 %v1274, %v1206
    %v1276 = vadd.f32 %v1275, %v1214
    %v1277 = vrot.slane %v1276, 4
    %v1278 = vadd.f32 %v1276, %v1277
    %v1279 = vrot.slane %v1278, 2
    %v1280 = vadd.f32 %v1278, %v1279
    %v1281 = vrot.slane %v1280, 1
    %v1282 = vadd.f32 %v1280, %v1281
    %v1283 = vadd.f32 %v1159, %v1167
    %v1284 = vadd.f32 %v1283, %v1175
    %v1285 = vadd.f32 %v1284, %v1183
    %v1286 = vadd.f32 %v1285, %v1191
    %v1287 = vadd.f32 %v1286, %v1199
    %v1288 = vadd.f32 %v1287, %v1207
    %v1289 = vadd.f32 %v1288, %v1215
    %v1290 = vrot.slane %v1289, 4
    %v1291 = vadd.f32 %v1289, %v1290
    %v1292 = vrot.slane %v1291, 2
    %v1293 = vadd.f32 %v1291, %v1292
    %v1294 = vrot.slane %v1293, 1
    %v1295 = vadd.f32 %v1293, %v1294
    %v1296 = vadd.f32 %v1160, %v1168
    %v1297 = vadd.f32 %v1296, %v1176
    %v1298 = vadd.f32 %v1297, %v1184
    %v1299 = vadd.f32 %v1298, %v1192
    %v1300 = vadd.f32 %v1299, %v1200
    %v1301 = vadd.f32 %v1300, %v1208
    %v1302 = vadd.f32 %v1301, %v1216
    %v1303 = vrot.slane %v1302, 4
    %v1304 = vadd.f32 %v1302, %v1303
    %v1305 = vrot.slane %v1304, 2
    %v1306 = vadd.f32 %v1304, %v1305
    %v1307 = vrot.slane %v1306, 1
    %v1308 = vadd.f32 %v1306, %v1307
    %v1309 = vadd.f32 %v1161, %v1169
    %v1310 = vadd.f32 %v1309, %v1177
    %v1311 = vadd.f32 %v1310, %v1185
    %v1312 = vadd.f32 %v1311, %v1193
    %v1313 = vadd.f32 %v1312, %v1201
    %v1314 = vadd.f32 %v1313, %v1209
    %v1315 = vadd.f32 %v1314, %v1217
    %v1316 = vrot.slane %v1315, 4
    %v1317 = vadd.f32 %v1315, %v1316
    %v1318 = vrot.slane %v1317, 2
    %v1319 = vadd.f32 %v1317, %v1318
    %v1320 = vrot.slane %v1319, 1
    %v1321 = vadd.f32 %v1319, %v1320
    %v1322 = vmul.f32 %v1062, 0.015625
    %v1323 = vmul.f32 %v1075, 0.015625
    %v1324 = vmul.f32 %v1088, 0.015625
    %v1325 = vmul.f32 %v1101, 0.015625
    %v1326 = vmul.f32 %v1114, 0.015625
    %v1327 = vmul.f32 %v1127, 0.015625
    %v1328 = vmul.f32 %v1140, 0.015625
    %v1329 = vmul.f32 %v1153, 0.015625
    %v1330 = vmul.f32 %v1230, 0.015625
    %v1331 = vmul.f32 %v1243, 0.015625
    %v1332 = vmul.f32 %v1256, 0.015625
    %v1333 = vmul.f32 %v1269, 0.015625
    %v1334 = vmul.f32 %v1282, 0.015625
    %v1335 = vmul.f32 %v1295, 0.015625
    %v1336 = vmul.f32 %v1308, 0.015625
    %v1337 = vmul.f32 %v1321, 0.015625
    %v1338 = vmul.f32 %v1322, %v1322
    %v1339 = vmul.f32 %v1323, %v1323
    %v1340 = vmul.f32 %v1324, %v1324
    %v1341 = vmul.f32 %v1325, %v1325
    %v1342 = vmul.f32 %v1326, %v1326
    %v1343 = vmul.f32 %v1327, %v1327
    %v1344 = vmul.f32 %v1328, %v1328
    %v1345 = vmul.f32 %v1329, %v1329
    %v1346 = vsub.f32 %v1330, %v1338
    %v1347 = vsub.f32 %v1331, %v1339
    %v1348 = vsub.f32 %v1332, %v1340
    %v1349 = vsub.f32 %v1333, %v1341
    %v1350 = vsub.f32 %v1334, %v1342
    %v1351 = vsub.f32 %v1335, %v1343
    %v1352 = vsub.f32 %v1336, %v1344
    %v1353 = vsub.f32 %v1337, %v1345
    %v1354 = vsub.f32 %v986, %v1322
    %v1355 = vsub.f32 %v987, %v1323
    %v1356 = vsub.f32 %v988, %v1324
    %v1357 = vsub.f32 %v989, %v1325
    %v1358 = vsub.f32 %v990, %v1326
    %v1359 = vsub.f32 %v991, %v1327
    %v1360 = vsub.f32 %v992, %v1328
    %v1361 = vsub.f32 %v993, %v1329
    %v1362 = vsub.f32 %v994, %v1322
    %v1363 = vsub.f32 %v995, %v1323
    %v1364 = vsub.f32 %v996, %v1324
    %v1365 = vsub.f32 %v997, %v1325
    %v1366 = vsub.f32 %v998, %v1326
    %v1367 = vsub.f32 %v999, %v1327
    %v1368 = vsub.f32 %v1000, %v1328
    %v1369 = vsub.f32 %v1001, %v1329
    %v1370 = vsub.f32 %v1002, %v1322
    %v1371 = vsub.f32 %v1003, %v1323
    %v1372 = vsub.f32 %v1004, %v1324
    %v1373 = vsub.f32 %v1005, %v1325
    %v1374 = vsub.f32 %v1006, %v1326
    %v1375 = vsub.f32 %v1007, %v1327
    %v1376 = vsub.f32 %v1008, %v1328
    %v1377 = vsub.f32 %v1009, %v1329
    %v1378 = vsub.f32 %v1010, %v1322
    %v1379 = vsub.f32 %v1011, %v1323
    %v1380 = vsub.f32 %v1012, %v1324
    %v1381 = vsub.f32 %v1013, %v1325
    %v1382 = vsub.f32 %v1014, %v1326
    %v1383 = vsub.f32 %v1015, %v1327
    %v1384 = vsub.f32 %v1016, %v1328
    %v1385 = vsub.f32 %v1017, %v1329
    %v1386 = vsub.f32 %v1018, %v1322
    %v1387 = vsub.f32 %v1019, %v1323
    %v1388 = vsub.f32 %v1020, %v1324
    %v1389 = vsub.f32 %v1021, %v1325
    %v1390 = vsub.f32 %v1022, %v1326
    %v1391 = vsub.f32 %v1023, %v1327
    %v1392 = vsub.f32 %v1024, %v1328
    %v1393 = vsub.f32 %v1025, %v1329
    %v1394 = vsub.f32 %v1026, %v1322
    %v1395 = vsub.f32 %v1027, %v1323
    %v1396 = vsub.f32 %v1028, %v1324
    %v1397 = vsub.f32 %v1029, %v1325
    %v1398 = vsub.f32 %v1030, %v1326
    %v1399 = vsub.f32 %v1031, %v1327
    %v1400 = vsub.f32 %v1032, %v1328
    %v1401 = vsub.f32 %v1033, %v1329
    %v1402 = vsub.f32 %v1034, %v1322
    %v1403 = vsub.f32 %v1035, %v1323
    %v1404 = vsub.f32 %v1036, %v1324
    %v1405 = vsub.f32 %v1037, %v1325
    %v1406 = vsub.f32 %v1038, %v1326
    %v1407 = vsub.f32 %v1039, %v1327
    %v1408 = vsub.f32 %v1040, %v1328
    %v1409 = vsub.f32 %v1041, %v1329
    %v1410 = vsub.f32 %v1042, %v1322
    %v1411 = vsub.f32 %v1043, %v1323
    %v1412 = vsub.f32 %v1044, %v1324
    %v1413 = vsub.f32 %v1045, %v1325
    %v1414 = vsub.f32 %v1046, %v1326
    %v1415 = vsub.f32 %v1047, %v1327
    %v1416 = vsub.f32 %v1048, %v1328
    %v1417 = vsub.f32 %v1049, %v1329
    %v1418 = vadd.f32 %v1346, 1e-05
    %v1419 = vadd.f32 %v1347, 1e-05
    %v1420 = vadd.f32 %v1348, 1e-05
    %v1421 = vadd.f32 %v1349, 1e-05
    %v1422 = vadd.f32 %v1350, 1e-05
    %v1423 = vadd.f32 %v1351, 1e-05
    %v1424 = vadd.f32 %v1352, 1e-05
    %v1425 = vadd.f32 %v1353, 1e-05
    %v1426 = vrsqrt.pop %v1418
    %v1427 = vrsqrt.pop %v1419
    %v1428 = vrsqrt.pop %v1420
    %v1429 = vrsqrt.pop %v1421
    %v1430 = vrsqrt.pop %v1422
    %v1431 = vrsqrt.pop %v1423
    %v1432 = vrsqrt.pop %v1424
    %v1433 = vrsqrt.pop %v1425
    %v1434 = vmul.f32 %v1354, %v1426
    %v1435 = vmul.f32 %v1355, %v1427
    %v1436 = vmul.f32 %v1356, %v1428
    %v1437 = vmul.f32 %v1357, %v1429
    %v1438 = vmul.f32 %v1358, %v1430
    %v1439 = vmul.f32 %v1359, %v1431
    %v1440 = vmul.f32 %v1360, %v1432
    %v1441 = vmul.f32 %v1361, %v1433
    %v1442 = vmul.f32 %v1362, %v1426
    %v1443 = vmul.f32 %v1363, %v1427
    %v1444 = vmul.f32 %v1364, %v1428
    %v1445 = vmul.f32 %v1365, %v1429
    %v1446 = vmul.f32 %v1366, %v1430
    %v1447 = vmul.f32 %v1367, %v1431
    %v1448 = vmul.f32 %v1368, %v1432
    %v1449 = vmul.f32 %v1369, %v1433
    %v1450 = vmul.f32 %v1370, %v1426
    %v1451 = vmul.f32 %v1371, %v1427
    %v1452 = vmul.f32 %v1372, %v1428
    %v1453 = vmul.f32 %v1373, %v1429
    %v1454 = vmul.f32 %v1374, %v1430
    %v1455 = vmul.f32 %v1375, %v1431
    %v1456 = vmul.f32 %v1376, %v1432
    %v1457 = vmul.f32 %v1377, %v1433
    %v1458 = vmul.f32 %v1378, %v1426
    %v1459 = vmul.f32 %v1379, %v1427
    %v1460 = vmul.f32 %v1380, %v1428
    %v1461 = vmul.f32 %v1381, %v1429
    %v1462 = vmul.f32 %v1382, %v1430
    %v1463 = vmul.f32 %v1383, %v1431
    %v1464 = vmul.f32 %v1384, %v1432
    %v1465 = vmul.f32 %v1385, %v1433
    %v1466 = vmul.f32 %v1386, %v1426
    %v1467 = vmul.f32 %v1387, %v1427
    %v1468 = vmul.f32 %v1388, %v1428
    %v1469 = vmul.f32 %v1389, %v1429
    %v1470 = vmul.f32 %v1390, %v1430
    %v1471 = vmul.f32 %v1391, %v1431
    %v1472 = vmul.f32 %v1392, %v1432
    %v1473 = vmul.f32 %v1393, %v1433
    %v1474 = vmul.f32 %v1394, %v1426
    %v1475 = vmul.f32 %v1395, %v1427
    %v1476 = vmul.f32 %v1396, %v1428
    %v1477 = vmul.f32 %v1397, %v1429
    %v1478 = vmul.f32 %v1398, %v1430
    %v1479 = vmul.f32 %v1399, %v1431
    %v1480 = vmul.f32 %v1400, %v1432
    %v1481 = vmul.f32 %v1401, %v1433
    %v1482 = vmul.f32 %v1402, %v1426
    %v1483 = vmul.f32 %v1403, %v1427
    %v1484 = vmul.f32 %v1404, %v1428
    %v1485 = vmul.f32 %v1405, %v1429
    %v1486 = vmul.f32 %v1406, %v1430
    %v1487 = vmul.f32 %v1407, %v1431
    %v1488 = vmul.f32 %v1408, %v1432
    %v1489 = vmul.f32 %v1409, %v1433
    %v1490 = vmul.f32 %v1410, %v1426
    %v1491 = vmul.f32 %v1411, %v1427
    %v1492 = vmul.f32 %v1412, %v1428
    %v1493 = vmul.f32 %v1413, %v1429
    %v1494 = vmul.f32 %v1414, %v1430
    %v1495 = vmul.f32 %v1415, %v1431
    %v1496 = vmul.f32 %v1416, %v1432
    %v1497 = vmul.f32 %v1417, %v1433
    %v1498 = vlaneseq
    %v1499 = vshrl.u32 %v1498, 7
    %v1500 = vsub.s32 1, %v1499
    %v1501 = vrot.slane %v70, %v1500
    %v1502 = vlaneseq
    %v1503 = vshrl.u32 %v1502, 7
    %v1504 = vsub.s32 5, %v1503
    %v1505 = vrot.slane %v70, %v1504
    %v1506 = vlaneseq
    %v1507 = vshrl.u32 %v1506, 7
    %v1508 = vsub.s32 1, %v1507
    %v1509 = vrot.slane %v71, %v1508
    %v1510 = vlaneseq
    %v1511 = vshrl.u32 %v1510, 7
    %v1512 = vsub.s32 5, %v1511
    %v1513 = vrot.slane %v71, %v1512
    %v1514 = vlaneseq
    %v1515 = vshrl.u32 %v1514, 7
    %v1516 = vsub.s32 1, %v1515
    %v1517 = vrot.slane %v72, %v1516
    %v1518 = vlaneseq
    %v1519 = vshrl.u32 %v1518, 7
    %v1520 = vsub.s32 5, %v1519
    %v1521 = vrot.slane %v72, %v1520
    %v1522 = vlaneseq
    %v1523 = vshrl.u32 %v1522, 7
    %v1524 = vsub.s32 1, %v1523
    %v1525 = vrot.slane %v73, %v1524
    %v1526 = vlaneseq
    %v1527 = vshrl.u32 %v1526, 7
    %v1528 = vsub.s32 5, %v1527
    %v1529 = vrot.slane %v73, %v1528
    %v1538 = vlaneseq
    %v1539 = vshrl.u32 %v1538, 7
    %v1540 = vsub.s32 1, %v1539
    %v1541 = vrot.slane %v1501, %v1540
    %v1542 = vlaneseq
    %v1543 = vshrl.u32 %v1542, 7
    %v1544 = vsub.s32 1, %v1543
    %v1545 = vrot.slane %v1505, %v1544
    %v1546 = vlaneseq
    %v1547 = vshrl.u32 %v1546, 7
    %v1548 = vsub.s32 1, %v1547
    %v1549 = vrot.slane %v1509, %v1548
    %v1550 = vlaneseq
    %v1551 = vshrl.u32 %v1550, 7
    %v1552 = vsub.s32 1, %v1551
    %v1553 = vrot.slane %v1513, %v1552
    %v1554 = vlaneseq
    %v1555 = vshrl.u32 %v1554, 7
    %v1556 = vsub.s32 1, %v1555
    %v1557 = vrot.slane %v1517, %v1556
    %v1558 = vlaneseq
    %v1559 = vshrl.u32 %v1558, 7
    %v1560 = vsub.s32 1, %v1559
    %v1561 = vrot.slane %v1521, %v1560
    %v1562 = vlaneseq
    %v1563 = vshrl.u32 %v1562, 7
    %v1564 = vsub.s32 1, %v1563
    %v1565 = vrot.slane %v1525, %v1564
    %v1566 = vlaneseq
    %v1567 = vshrl.u32 %v1566, 7
    %v1568 = vsub.s32 1, %v1567
    %v1569 = vrot.slane %v1529, %v1568
    %v1570 = vmul.f32 %v1434, %v1541
    %v1571 = vmul.f32 %v1435, %v1545
    %v1572 = vmul.f32 %v1436, %v1549
    %v1573 = vmul.f32 %v1437, %v1553
    %v1574 = vmul.f32 %v1438, %v1557
    %v1575 = vmul.f32 %v1439, %v1561
    %v1576 = vmul.f32 %v1440, %v1565
    %v1577 = vmul.f32 %v1441, %v1569
    %v1578 = vmul.f32 %v1442, %v1541
    %v1579 = vmul.f32 %v1443, %v1545
    %v1580 = vmul.f32 %v1444, %v1549
    %v1581 = vmul.f32 %v1445, %v1553
    %v1582 = vmul.f32 %v1446, %v1557
    %v1583 = vmul.f32 %v1447, %v1561
    %v1584 = vmul.f32 %v1448, %v1565
    %v1585 = vmul.f32 %v1449, %v1569
    %v1586 = vmul.f32 %v1450, %v1541
    %v1587 = vmul.f32 %v1451, %v1545
    %v1588 = vmul.f32 %v1452, %v1549
    %v1589 = vmul.f32 %v1453, %v1553
    %v1590 = vmul.f32 %v1454, %v1557
    %v1591 = vmul.f32 %v1455, %v1561
    %v1592 = vmul.f32 %v1456, %v1565
    %v1593 = vmul.f32 %v1457, %v1569
    %v1594 = vmul.f32 %v1458, %v1541
    %v1595 = vmul.f32 %v1459, %v1545
    %v1596 = vmul.f32 %v1460, %v1549
    %v1597 = vmul.f32 %v1461, %v1553
    %v1598 = vmul.f32 %v1462, %v1557
    %v1599 = vmul.f32 %v1463, %v1561
    %v1600 = vmul.f32 %v1464, %v1565
    %v1601 = vmul.f32 %v1465, %v1569
    %v1602 = vmul.f32 %v1466, %v1541
    %v1603 = vmul.f32 %v1467, %v1545
    %v1604 = vmul.f32 %v1468, %v1549
    %v1605 = vmul.f32 %v1469, %v1553
    %v1606 = vmul.f32 %v1470, %v1557
    %v1607 = vmul.f32 %v1471, %v1561
    %v1608 = vmul.f32 %v1472, %v1565
    %v1609 = vmul.f32 %v1473, %v1569
    %v1610 = vmul.f32 %v1474, %v1541
    %v1611 = vmul.f32 %v1475, %v1545
    %v1612 = vmul.f32 %v1476, %v1549
    %v1613 = vmul.f32 %v1477, %v1553
    %v1614 = vmul.f32 %v1478, %v1557
    %v1615 = vmul.f32 %v1479, %v1561
    %v1616 = vmul.f32 %v1480, %v1565
    %v1617 = vmul.f32 %v1481, %v1569
    %v1618 = vmul.f32 %v1482, %v1541
    %v1619 = vmul.f32 %v1483, %v1545
    %v1620 = vmul.f32 %v1484, %v1549
    %v1621 = vmul.f32 %v1485, %v1553
    %v1622 = vmul.f32 %v1486, %v1557
    %v1623 = vmul.f32 %v1487, %v1561
    %v1624 = vmul.f32 %v1488, %v1565
    %v1625 = vmul.f32 %v1489, %v1569
    %v1626 = vmul.f32 %v1490, %v1541
    %v1627 = vmul.f32 %v1491, %v1545
    %v1628 = vmul.f32 %v1492, %v1549
    %v1629 = vmul.f32 %v1493, %v1553
    %v1630 = vmul.f32 %v1494, %v1557
    %v1631 = vmul.f32 %v1495, %v1561
    %v1632 = vmul.f32 %v1496, %v1565
    %v1633 = vmul.f32 %v1497, %v1569
    %v1634 = vlaneseq
    %v1635 = vshrl.u32 %v1634, 7
    %v1636 = vsub.s32 2, %v1635
    %v1637 = vrot.slane %v70, %v1636
    %v1638 = vlaneseq
    %v1639 = vshrl.u32 %v1638, 7
    %v1640 = vsub.s32 6, %v1639
    %v1641 = vrot.slane %v70, %v1640
    %v1642 = vlaneseq
    %v1643 = vshrl.u32 %v1642, 7
    %v1644 = vsub.s32 2, %v1643
    %v1645 = vrot.slane %v71, %v1644
    %v1646 = vlaneseq
    %v1647 = vshrl.u32 %v1646, 7
    %v1648 = vsub.s32 6, %v1647
    %v1649 = vrot.slane %v71, %v1648
    %v1650 = vlaneseq
    %v1651 = vshrl.u32 %v1650, 7
    %v1652 = vsub.s32 2, %v1651
    %v1653 = vrot.slane %v72, %v1652
    %v1654 = vlaneseq
    %v1655 = vshrl.u32 %v1654, 7
    %v1656 = vsub.s32 6, %v1655
    %v1657 = vrot.slane %v72, %v1656
    %v1658 = vlaneseq
    %v1659 = vshrl.u32 %v1658, 7
    %v1660 = vsub.s32 2, %v1659
    %v1661 = vrot.slane %v73, %v1660
    %v1662 = vlaneseq
    %v1663 = vshrl.u32 %v1662, 7
    %v1664 = vsub.s32 6, %v1663
    %v1665 = vrot.slane %v73, %v1664
    %v1674 = vlaneseq
    %v1675 = vshrl.u32 %v1674, 7
    %v1676 = vsub.s32 2, %v1675
    %v1677 = vrot.slane %v1637, %v1676
    %v1678 = vlaneseq
    %v1679 = vshrl.u32 %v1678, 7
    %v1680 = vsub.s32 2, %v1679
    %v1681 = vrot.slane %v1641, %v1680
    %v1682 = vlaneseq
    %v1683 = vshrl.u32 %v1682, 7
    %v1684 = vsub.s32 2, %v1683
    %v1685 = vrot.slane %v1645, %v1684
    %v1686 = vlaneseq
    %v1687 = vshrl.u32 %v1686, 7
    %v1688 = vsub.s32 2, %v1687
    %v1689 = vrot.slane %v1649, %v1688
    %v1690 = vlaneseq
    %v1691 = vshrl.u32 %v1690, 7
    %v1692 = vsub.s32 2, %v1691
    %v1693 = vrot.slane %v1653, %v1692
    %v1694 = vlaneseq
    %v1695 = vshrl.u32 %v1694, 7
    %v1696 = vsub.s32 2, %v1695
    %v1697 = vrot.slane %v1657, %v1696
    %v1698 = vlaneseq
    %v1699 = vshrl.u32 %v1698, 7
    %v1700 = vsub.s32 2, %v1699
    %v1701 = vrot.slane %v1661, %v1700
    %v1702 = vlaneseq
    %v1703 = vshrl.u32 %v1702, 7
    %v1704 = vsub.s32 2, %v1703
    %v1705 = vrot.slane %v1665, %v1704
    %v1706 = vadd.f32 %v1570, %v1677
    %v1707 = vadd.f32 %v1571, %v1681
    %v1708 = vadd.f32 %v1572, %v1685
    %v1709 = vadd.f32 %v1573, %v1689
    %v1710 = vadd.f32 %v1574, %v1693
    %v1711 = vadd.f32 %v1575, %v1697
    %v1712 = vadd.f32 %v1576, %v1701
    %v1713 = vadd.f32 %v1577, %v1705
    %v1714 = vadd.f32 %v1578, %v1677
    %v1715 = vadd.f32 %v1579, %v1681
    %v1716 = vadd.f32 %v1580, %v1685
    %v1717 = vadd.f32 %v1581, %v1689
    %v1718 = vadd.f32 %v1582, %v1693
    %v1719 = vadd.f32 %v1583, %v1697
    %v1720 = vadd.f32 %v1584, %v1701
    %v1721 = vadd.f32 %v1585, %v1705
    %v1722 = vadd.f32 %v1586, %v1677
    %v1723 = vadd.f32 %v1587, %v1681
    %v1724 = vadd.f32 %v1588, %v1685
    %v1725 = vadd.f32 %v1589, %v1689
    %v1726 = vadd.f32 %v1590, %v1693
    %v1727 = vadd.f32 %v1591, %v1697
    %v1728 = vadd.f32 %v1592, %v1701
    %v1729 = vadd.f32 %v1593, %v1705
    %v1730 = vadd.f32 %v1594, %v1677
    %v1731 = vadd.f32 %v1595, %v1681
    %v1732 = vadd.f32 %v1596, %v1685
    %v1733 = vadd.f32 %v1597, %v1689
    %v1734 = vadd.f32 %v1598, %v1693
    %v1735 = vadd.f32 %v1599, %v1697
    %v1736 = vadd.f32 %v1600, %v1701
    %v1737 = vadd.f32 %v1601, %v1705
    %v1738 = vadd.f32 %v1602, %v1677
    %v1739 = vadd.f32 %v1603, %v1681
    %v1740 = vadd.f32 %v1604, %v1685
    %v1741 = vadd.f32 %v1605, %v1689
    %v1742 = vadd.f32 %v1606, %v1693
    %v1743 = vadd.f32 %v1607, %v1697
    %v1744 = vadd.f32 %v1608, %v1701
    %v1745 = vadd.f32 %v1609, %v1705
    %v1746 = vadd.f32 %v1610, %v1677
    %v1747 = vadd.f32 %v1611, %v1681
    %v1748 = vadd.f32 %v1612, %v1685
    %v1749 = vadd.f32 %v1613, %v1689
    %v1750 = vadd.f32 %v1614, %v1693
    %v1751 = vadd.f32 %v1615, %v1697
    %v1752 = vadd.f32 %v1616, %v1701
    %v1753 = vadd.f32 %v1617, %v1705
    %v1754 = vadd.f32 %v1618, %v1677
    %v1755 = vadd.f32 %v1619, %v1681
    %v1756 = vadd.f32 %v1620, %v1685
    %v1757 = vadd.f32 %v1621, %v1689
    %v1758 = vadd.f32 %v1622, %v1693
    %v1759 = vadd.f32 %v1623, %v1697
    %v1760 = vadd.f32 %v1624, %v1701
    %v1761 = vadd.f32 %v1625, %v1705
    %v1762 = vadd.f32 %v1626, %v1677
    %v1763 = vadd.f32 %v1627, %v1681
    %v1764 = vadd.f32 %v1628, %v1685
    %v1765 = vadd.f32 %v1629, %v1689
    %v1766 = vadd.f32 %v1630, %v1693
    %v1767 = vadd.f32 %v1631, %v1697
    %v1768 = vadd.f32 %v1632, %v1701
    %v1769 = vadd.f32 %v1633, %v1705
    %v1770 = vld [vmem:[%s3] sm:$0xff]
    %v1771 = vld [vmem:[%s3 + $0x8] sm:$0xff]
    %v1772 = vld [vmem:[%s3 + $0x10] sm:$0xff]
    %v1773 = vld [vmem:[%s3 + $0x18] sm:$0xff]
    %v1774 = vld [vmem:[%s3 + $0x20] sm:$0xff]
    %v1775 = vld [vmem:[%s3 + $0x28] sm:$0xff]
    %v1776 = vld [vmem:[%s3 + $0x30] sm:$0xff]
    %v1777 = vld [vmem:[%s3 + $0x38] sm:$0xff]
    %v1778 = vlaneseq
    %v1779 = vshrl.u32 %v1778, 7
    %v1780 = vsub.s32 3, %v1779
    %v1781 = vrot.slane %v69, %v1780
    %1782 = vmatprep.subr.mxu0 0.0
    %1783 = vmatpush1.xpose.msra.mxu0 0.0
    %1784 = vmatprep.subr.mxu0 0.0
    %1785 = vmatpush1.xpose.msra.mxu0 0.0
    %1786 = vmatprep.subr.mxu0 0.0
    %1787 = vmatpush1.xpose.msra.mxu0 0.0
    %1788 = vmatprep.subr.mxu0 0.0
    %1789 = vmatpush1.xpose.msra.mxu0 0.0
    %1790 = vmatprep.subr.mxu0 0.0
    %1791 = vmatpush1.xpose.msra.mxu0 0.0
    %1792 = vmatprep.subr.mxu0 0.0
    %1793 = vmatpush1.xpose.msra.mxu0 0.0
    %1794 = vmatprep.subr.mxu0 0.0
    %1795 = vmatpush1.xpose.msra.mxu0 0.0
    %1796 = vmatprep.subr.mxu0 0.0
    %1797 = vmatpush1.xpose.msra.mxu0 0.0
    %1798 = vmatprep.subr.mxu0 0.0
    %1799 = vmatpush1.xpose.msra.mxu0 0.0
    %1800 = vmatprep.subr.mxu0 0.0
    %1801 = vmatpush1.xpose.msra.mxu0 0.0
    %1802 = vmatprep.subr.mxu0 0.0
    %1803 = vmatpush1.xpose.msra.mxu0 0.0
    %1804 = vmatprep.subr.mxu0 0.0
    %1805 = vmatpush1.xpose.msra.mxu0 0.0
    %1806 = vmatprep.subr.mxu0 0.0
    %1807 = vmatpush1.xpose.msra.mxu0 0.0
    %1808 = vmatprep.subr.mxu0 0.0
    %1809 = vmatpush1.xpose.msra.mxu0 0.0
    %1810 = vmatprep.subr.mxu0 0.0
    %1811 = vmatpush1.xpose.msra.mxu0 0.0
    %1812 = vmatprep.subr.mxu0 %v1771
    %1813 = vmatpush1.xpose.msra.mxu0 %v1770
    %1814 = vmatprep.subr.mxu0 0.0
    %1815 = vmatpush2.xpose.msra.mxu0 0.0
    %1816 = vmatprep.subr.mxu0 0.0
    %1817 = vmatpush2.xpose.msra.mxu0 0.0
    %1818 = vmatprep.subr.mxu0 0.0
    %1819 = vmatpush2.xpose.msra.mxu0 0.0
    %1820 = vmatprep.subr.mxu0 0.0
    %1821 = vmatpush2.xpose.msra.mxu0 0.0
    %1822 = vmatprep.subr.mxu0 0.0
    %1823 = vmatpush2.xpose.msra.mxu0 0.0
    %1824 = vmatprep.subr.mxu0 0.0
    %1825 = vmatpush2.xpose.msra.mxu0 0.0
    %1826 = vmatprep.subr.mxu0 0.0
    %1827 = vmatpush2.xpose.msra.mxu0 0.0
    %1828 = vmatprep.subr.mxu0 0.0
    %1829 = vmatpush2.xpose.msra.mxu0 0.0
    %1830 = vmatprep.subr.mxu0 0.0
    %1831 = vmatpush2.xpose.msra.mxu0 0.0
    %1832 = vmatprep.subr.mxu0 0.0
    %1833 = vmatpush2.xpose.msra.mxu0 0.0
    %1834 = vmatprep.subr.mxu0 0.0
    %1835 = vmatpush2.xpose.msra.mxu0 0.0
    %1836 = vmatprep.subr.mxu0 0.0
    %1837 = vmatpush2.xpose.msra.mxu0 0.0
    %1838 = vmatprep.subr.mxu0 0.0
    %1839 = vmatpush2.xpose.msra.mxu0 0.0
    %1840 = vmatprep.subr.mxu0 0.0
    %1841 = vmatpush2.xpose.msra.mxu0 0.0
    %1842 = vmatprep.subr.mxu0 0.0
    %1843 = vmatpush2.xpose.msra.mxu0 0.0
    %1844 = vmatprep.subr.mxu0 0.0
    %1845 = vmatpush2.xpose.msra.mxu0 0.0
    %1846 = vmatprep.mubr.f32.mxu0 %v1707
    %1847 = vmatmul.mubr.f32.gmra.mxu0 %v1706
    %v1848 = vpop.f32.mrf.mxu0
    %v1849 = vadd.f32 %v1781, %v1848
    %v1850 = vpop.f32.mrf.mxu0
    %1851 = vmatprep.mubr.f32.mxu0 %v1715
    %1852 = vmatmul.mubr.f32.gmra.mxu0 %v1714
    %v1853 = vpop.f32.mrf.mxu0
    %v1854 = vadd.f32 %v1781, %v1853
    %v1855 = vpop.f32.mrf.mxu0
    %1856 = vmatprep.mubr.f32.mxu0 %v1723
    %1857 = vmatmul.mubr.f32.gmra.mxu0 %v1722
    %v1858 = vpop.f32.mrf.mxu0
    %v1859 = vadd.f32 %v1781, %v1858
    %v1860 = vpop.f32.mrf.mxu0
    %1861 = vmatprep.mubr.f32.mxu0 %v1731
    %1862 = vmatmul.mubr.f32.gmra.mxu0 %v1730
    %v1863 = vpop.f32.mrf.mxu0
    %v1864 = vadd.f32 %v1781, %v1863
    %v1865 = vpop.f32.mrf.mxu0
    %1866 = vmatprep.mubr.f32.mxu0 %v1739
    %1867 = vmatmul.mubr.f32.gmra.mxu0 %v1738
    %v1868 = vpop.f32.mrf.mxu0
    %v1869 = vadd.f32 %v1781, %v1868
    %v1870 = vpop.f32.mrf.mxu0
    %1871 = vmatprep.mubr.f32.mxu0 %v1747
    %1872 = vmatmul.mubr.f32.gmra.mxu0 %v1746
    %v1873 = vpop.f32.mrf.mxu0
    %v1874 = vadd.f32 %v1781, %v1873
    %v1875 = vpop.f32.mrf.mxu0
    %1876 = vmatprep.mubr.f32.mxu0 %v1755
    %1877 = vmatmul.mubr.f32.gmra.mxu0 %v1754
    %v1878 = vpop.f32.mrf.mxu0
    %v1879 = vadd.f32 %v1781, %v1878
    %v1880 = vpop.f32.mrf.mxu0
    %1881 = vmatprep.mubr.f32.mxu0 %v1763
    %1882 = vmatmul.mubr.f32.gmra.mxu0 %v1762
    %v1883 = vpop.f32.mrf.mxu0
    %v1884 = vadd.f32 %v1781, %v1883
    %v1885 = vpop.f32.mrf.mxu0
    %1886 = vdwg.mxu0
    %1887 = vmatprep.subr.mxu0 0.0
    %1888 = vmatpush1.xpose.msra.mxu0 0.0
    %1889 = vmatprep.subr.mxu0 0.0
    %1890 = vmatpush1.xpose.msra.mxu0 0.0
    %1891 = vmatprep.subr.mxu0 0.0
    %1892 = vmatpush1.xpose.msra.mxu0 0.0
    %1893 = vmatprep.subr.mxu0 0.0
    %1894 = vmatpush1.xpose.msra.mxu0 0.0
    %1895 = vmatprep.subr.mxu0 0.0
    %1896 = vmatpush1.xpose.msra.mxu0 0.0
    %1897 = vmatprep.subr.mxu0 0.0
    %1898 = vmatpush1.xpose.msra.mxu0 0.0
    %1899 = vmatprep.subr.mxu0 0.0
    %1900 = vmatpush1.xpose.msra.mxu0 0.0
    %1901 = vmatprep.subr.mxu0 0.0
    %1902 = vmatpush1.xpose.msra.mxu0 0.0
    %1903 = vmatprep.subr.mxu0 0.0
    %1904 = vmatpush1.xpose.msra.mxu0 0.0
    %1905 = vmatprep.subr.mxu0 0.0
    %1906 = vmatpush1.xpose.msra.mxu0 0.0
    %1907 = vmatprep.subr.mxu0 0.0
    %1908 = vmatpush1.xpose.msra.mxu0 0.0
    %1909 = vmatprep.subr.mxu0 0.0
    %1910 = vmatpush1.xpose.msra.mxu0 0.0
    %1911 = vmatprep.subr.mxu0 0.0
    %1912 = vmatpush1.xpose.msra.mxu0 0.0
    %1913 = vmatprep.subr.mxu0 0.0
    %1914 = vmatpush1.xpose.msra.mxu0 0.0
    %1915 = vmatprep.subr.mxu0 0.0
    %1916 = vmatpush1.xpose.msra.mxu0 0.0
    %1917 = vmatprep.subr.mxu0 %v1773
    %1918 = vmatpush1.xpose.msra.mxu0 %v1772
    %1919 = vmatprep.subr.mxu0 0.0
    %1920 = vmatpush2.xpose.msra.mxu0 0.0
    %1921 = vmatprep.subr.mxu0 0.0
    %1922 = vmatpush2.xpose.msra.mxu0 0.0
    %1923 = vmatprep.subr.mxu0 0.0
    %1924 = vmatpush2.xpose.msra.mxu0 0.0
    %1925 = vmatprep.subr.mxu0 0.0
    %1926 = vmatpush2.xpose.msra.mxu0 0.0
    %1927 = vmatprep.subr.mxu0 0.0
    %1928 = vmatpush2.xpose.msra.mxu0 0.0
    %1929 = vmatprep.subr.mxu0 0.0
    %1930 = vmatpush2.xpose.msra.mxu0 0.0
    %1931 = vmatprep.subr.mxu0 0.0
    %1932 = vmatpush2.xpose.msra.mxu0 0.0
    %1933 = vmatprep.subr.mxu0 0.0
    %1934 = vmatpush2.xpose.msra.mxu0 0.0
    %1935 = vmatprep.subr.mxu0 0.0
    %1936 = vmatpush2.xpose.msra.mxu0 0.0
    %1937 = vmatprep.subr.mxu0 0.0
    %1938 = vmatpush2.xpose.msra.mxu0 0.0
    %1939 = vmatprep.subr.mxu0 0.0
    %1940 = vmatpush2.xpose.msra.mxu0 0.0
    %1941 = vmatprep.subr.mxu0 0.0
    %1942 = vmatpush2.xpose.msra.mxu0 0.0
    %1943 = vmatprep.subr.mxu0 0.0
    %1944 = vmatpush2.xpose.msra.mxu0 0.0
    %1945 = vmatprep.subr.mxu0 0.0
    %1946 = vmatpush2.xpose.msra.mxu0 0.0
    %1947 = vmatprep.subr.mxu0 0.0
    %1948 = vmatpush2.xpose.msra.mxu0 0.0
    %1949 = vmatprep.subr.mxu0 0.0
    %1950 = vmatpush2.xpose.msra.mxu0 0.0
    %1951 = vmatprep.mubr.f32.mxu0 %v1709
    %1952 = vmatmul.mubr.f32.gmra.mxu0 %v1708
    %v1953 = vpop.f32.mrf.mxu0
    %v1954 = vadd.f32 %v1849, %v1953
    %v1955 = vpop.f32.mrf.mxu0
    %1956 = vmatprep.mubr.f32.mxu0 %v1717
    %1957 = vmatmul.mubr.f32.gmra.mxu0 %v1716
    %v1958 = vpop.f32.mrf.mxu0
    %v1959 = vadd.f32 %v1854, %v1958
    %v1960 = vpop.f32.mrf.mxu0
    %1961 = vmatprep.mubr.f32.mxu0 %v1725
    %1962 = vmatmul.mubr.f32.gmra.mxu0 %v1724
    %v1963 = vpop.f32.mrf.mxu0
    %v1964 = vadd.f32 %v1859, %v1963
    %v1965 = vpop.f32.mrf.mxu0
    %1966 = vmatprep.mubr.f32.mxu0 %v1733
    %1967 = vmatmul.mubr.f32.gmra.mxu0 %v1732
    %v1968 = vpop.f32.mrf.mxu0
    %v1969 = vadd.f32 %v1864, %v1968
    %v1970 = vpop.f32.mrf.mxu0
    %1971 = vmatprep.mubr.f32.mxu0 %v1741
    %1972 = vmatmul.mubr.f32.gmra.mxu0 %v1740
    %v1973 = vpop.f32.mrf.mxu0
    %v1974 = vadd.f32 %v1869, %v1973
    %v1975 = vpop.f32.mrf.mxu0
    %1976 = vmatprep.mubr.f32.mxu0 %v1749
    %1977 = vmatmul.mubr.f32.gmra.mxu0 %v1748
    %v1978 = vpop.f32.mrf.mxu0
    %v1979 = vadd.f32 %v1874, %v1978
    %v1980 = vpop.f32.mrf.mxu0
    %1981 = vmatprep.mubr.f32.mxu0 %v1757
    %1982 = vmatmul.mubr.f32.gmra.mxu0 %v1756
    %v1983 = vpop.f32.mrf.mxu0
    %v1984 = vadd.f32 %v1879, %v1983
    %v1985 = vpop.f32.mrf.mxu0
    %1986 = vmatprep.mubr.f32.mxu0 %v1765
    %1987 = vmatmul.mubr.f32.gmra.mxu0 %v1764
    %v1988 = vpop.f32.mrf.mxu0
    %v1989 = vadd.f32 %v1884, %v1988
    %v1990 = vpop.f32.mrf.mxu0
    %1991 = vdwg.mxu0
    %1992 = vmatprep.subr.mxu0 0.0
    %1993 = vmatpush1.xpose.msra.mxu0 0.0
    %1994 = vmatprep.subr.mxu0 0.0
    %1995 = vmatpush1.xpose.msra.mxu0 0.0
    %1996 = vmatprep.subr.mxu0 0.0
    %1997 = vmatpush1.xpose.msra.mxu0 0.0
    %1998 = vmatprep.subr.mxu0 0.0
    %1999 = vmatpush1.xpose.msra.mxu0 0.0
    %2000 = vmatprep.subr.mxu0 0.0
    %2001 = vmatpush1.xpose.msra.mxu0 0.0
    %2002 = vmatprep.subr.mxu0 0.0
    %2003 = vmatpush1.xpose.msra.mxu0 0.0
    %2004 = vmatprep.subr.mxu0 0.0
    %2005 = vmatpush1.xpose.msra.mxu0 0.0
    %2006 = vmatprep.subr.mxu0 0.0
    %2007 = vmatpush1.xpose.msra.mxu0 0.0
    %2008 = vmatprep.subr.mxu0 0.0
    %2009 = vmatpush1.xpose.msra.mxu0 0.0
    %2010 = vmatprep.subr.mxu0 0.0
    %2011 = vmatpush1.xpose.msra.mxu0 0.0
    %2012 = vmatprep.subr.mxu0 0.0
    %2013 = vmatpush1.xpose.msra.mxu0 0.0
    %2014 = vmatprep.subr.mxu0 0.0
    %2015 = vmatpush1.xpose.msra.mxu0 0.0
    %2016 = vmatprep.subr.mxu0 0.0
    %2017 = vmatpush1.xpose.msra.mxu0 0.0
    %2018 = vmatprep.subr.mxu0 0.0
    %2019 = vmatpush1.xpose.msra.mxu0 0.0
    %2020 = vmatprep.subr.mxu0 0.0
    %2021 = vmatpush1.xpose.msra.mxu0 0.0
    %2022 = vmatprep.subr.mxu0 %v1775
    %2023 = vmatpush1.xpose.msra.mxu0 %v1774
    %2024 = vmatprep.subr.mxu0 0.0
    %2025 = vmatpush2.xpose.msra.mxu0 0.0
    %2026 = vmatprep.subr.mxu0 0.0
    %2027 = vmatpush2.xpose.msra.mxu0 0.0
    %2028 = vmatprep.subr.mxu0 0.0
    %2029 = vmatpush2.xpose.msra.mxu0 0.0
    %2030 = vmatprep.subr.mxu0 0.0
    %2031 = vmatpush2.xpose.msra.mxu0 0.0
    %2032 = vmatprep.subr.mxu0 0.0
    %2033 = vmatpush2.xpose.msra.mxu0 0.0
    %2034 = vmatprep.subr.mxu0 0.0
    %2035 = vmatpush2.xpose.msra.mxu0 0.0
    %2036 = vmatprep.subr.mxu0 0.0
    %2037 = vmatpush2.xpose.msra.mxu0 0.0
    %2038 = vmatprep.subr.mxu0 0.0
    %2039 = vmatpush2.xpose.msra.mxu0 0.0
    %2040 = vmatprep.subr.mxu0 0.0
    %2041 = vmatpush2.xpose.msra.mxu0 0.0
    %2042 = vmatprep.subr.mxu0 0.0
    %2043 = vmatpush2.xpose.msra.mxu0 0.0
    %2044 = vmatprep.subr.mxu0 0.0
    %2045 = vmatpush2.xpose.msra.mxu0 0.0
    %2046 = vmatprep.subr.mxu0 0.0
    %2047 = vmatpush2.xpose.msra.mxu0 0.0
    %2048 = vmatprep.subr.mxu0 0.0
    %2049 = vmatpush2.xpose.msra.mxu0 0.0
    %2050 = vmatprep.subr.mxu0 0.0
    %2051 = vmatpush2.xpose.msra.mxu0 0.0
    %2052 = vmatprep.subr.mxu0 0.0
    %2053 = vmatpush2.xpose.msra.mxu0 0.0
    %2054 = vmatprep.subr.mxu0 0.0
    %2055 = vmatpush2.xpose.msra.mxu0 0.0
    %2056 = vmatprep.mubr.f32.mxu0 %v1711
    %2057 = vmatmul.mubr.f32.gmra.mxu0 %v1710
    %v2058 = vpop.f32.mrf.mxu0
    %v2059 = vadd.f32 %v1954, %v2058
    %v2060 = vpop.f32.mrf.mxu0
    %2061 = vmatprep.mubr.f32.mxu0 %v1719
    %2062 = vmatmul.mubr.f32.gmra.mxu0 %v1718
    %v2063 = vpop.f32.mrf.mxu0
    %v2064 = vadd.f32 %v1959, %v2063
    %v2065 = vpop.f32.mrf.mxu0
    %2066 = vmatprep.mubr.f32.mxu0 %v1727
    %2067 = vmatmul.mubr.f32.gmra.mxu0 %v1726
    %v2068 = vpop.f32.mrf.mxu0
    %v2069 = vadd.f32 %v1964, %v2068
    %v2070 = vpop.f32.mrf.mxu0
    %2071 = vmatprep.mubr.f32.mxu0 %v1735
    %2072 = vmatmul.mubr.f32.gmra.mxu0 %v1734
    %v2073 = vpop.f32.mrf.mxu0
    %v2074 = vadd.f32 %v1969, %v2073
    %v2075 = vpop.f32.mrf.mxu0
    %2076 = vmatprep.mubr.f32.mxu0 %v1743
    %2077 = vmatmul.mubr.f32.gmra.mxu0 %v1742
    %v2078 = vpop.f32.mrf.mxu0
    %v2079 = vadd.f32 %v1974, %v2078
    %v2080 = vpop.f32.mrf.mxu0
    %2081 = vmatprep.mubr.f32.mxu0 %v1751
    %2082 = vmatmul.mubr.f32.gmra.mxu0 %v1750
    %v2083 = vpop.f32.mrf.mxu0
    %v2084 = vadd.f32 %v1979, %v2083
    %v2085 = vpop.f32.mrf.mxu0
    %2086 = vmatprep.mubr.f32.mxu0 %v1759
    %2087 = vmatmul.mubr.f32.gmra.mxu0 %v1758
    %v2088 = vpop.f32.mrf.mxu0
    %v2089 = vadd.f32 %v1984, %v2088
    %v2090 = vpop.f32.mrf.mxu0
    %2091 = vmatprep.mubr.f32.mxu0 %v1767
    %2092 = vmatmul.mubr.f32.gmra.mxu0 %v1766
    %v2093 = vpop.f32.mrf.mxu0
    %v2094 = vadd.f32 %v1989, %v2093
    %v2095 = vpop.f32.mrf.mxu0
    %2096 = vdwg.mxu0
    %2097 = vmatprep.subr.mxu0 0.0
    %2098 = vmatpush1.xpose.msra.mxu0 0.0
    %2099 = vmatprep.subr.mxu0 0.0
    %2100 = vmatpush1.xpose.msra.mxu0 0.0
    %2101 = vmatprep.subr.mxu0 0.0
    %2102 = vmatpush1.xpose.msra.mxu0 0.0
    %2103 = vmatprep.subr.mxu0 0.0
    %2104 = vmatpush1.xpose.msra.mxu0 0.0
    %2105 = vmatprep.subr.mxu0 0.0
    %2106 = vmatpush1.xpose.msra.mxu0 0.0
    %2107 = vmatprep.subr.mxu0 0.0
    %2108 = vmatpush1.xpose.msra.mxu0 0.0
    %2109 = vmatprep.subr.mxu0 0.0
    %2110 = vmatpush1.xpose.msra.mxu0 0.0
    %2111 = vmatprep.subr.mxu0 0.0
    %2112 = vmatpush1.xpose.msra.mxu0 0.0
    %2113 = vmatprep.subr.mxu0 0.0
    %2114 = vmatpush1.xpose.msra.mxu0 0.0
    %2115 = vmatprep.subr.mxu0 0.0
    %2116 = vmatpush1.xpose.msra.mxu0 0.0
    %2117 = vmatprep.subr.mxu0 0.0
    %2118 = vmatpush1.xpose.msra.mxu0 0.0
    %2119 = vmatprep.subr.mxu0 0.0
    %2120 = vmatpush1.xpose.msra.mxu0 0.0
    %2121 = vmatprep.subr.mxu0 0.0
    %2122 = vmatpush1.xpose.msra.mxu0 0.0
    %2123 = vmatprep.subr.mxu0 0.0
    %2124 = vmatpush1.xpose.msra.mxu0 0.0
    %2125 = vmatprep.subr.mxu0 0.0
    %2126 = vmatpush1.xpose.msra.mxu0 0.0
    %2127 = vmatprep.subr.mxu0 %v1777
    %2128 = vmatpush1.xpose.msra.mxu0 %v1776
    %2129 = vmatprep.subr.mxu0 0.0
    %2130 = vmatpush2.xpose.msra.mxu0 0.0
    %2131 = vmatprep.subr.mxu0 0.0
    %2132 = vmatpush2.xpose.msra.mxu0 0.0
    %2133 = vmatprep.subr.mxu0 0.0
    %2134 = vmatpush2.xpose.msra.mxu0 0.0
    %2135 = vmatprep.subr.mxu0 0.0
    %2136 = vmatpush2.xpose.msra.mxu0 0.0
    %2137 = vmatprep.subr.mxu0 0.0
    %2138 = vmatpush2.xpose.msra.mxu0 0.0
    %2139 = vmatprep.subr.mxu0 0.0
    %2140 = vmatpush2.xpose.msra.mxu0 0.0
    %2141 = vmatprep.subr.mxu0 0.0
    %2142 = vmatpush2.xpose.msra.mxu0 0.0
    %2143 = vmatprep.subr.mxu0 0.0
    %2144 = vmatpush2.xpose.msra.mxu0 0.0
    %2145 = vmatprep.subr.mxu0 0.0
    %2146 = vmatpush2.xpose.msra.mxu0 0.0
    %2147 = vmatprep.subr.mxu0 0.0
    %2148 = vmatpush2.xpose.msra.mxu0 0.0
    %2149 = vmatprep.subr.mxu0 0.0
    %2150 = vmatpush2.xpose.msra.mxu0 0.0
    %2151 = vmatprep.subr.mxu0 0.0
    %2152 = vmatpush2.xpose.msra.mxu0 0.0
    %2153 = vmatprep.subr.mxu0 0.0
    %2154 = vmatpush2.xpose.msra.mxu0 0.0
    %2155 = vmatprep.subr.mxu0 0.0
    %2156 = vmatpush2.xpose.msra.mxu0 0.0
    %2157 = vmatprep.subr.mxu0 0.0
    %2158 = vmatpush2.xpose.msra.mxu0 0.0
    %2159 = vmatprep.subr.mxu0 0.0
    %2160 = vmatpush2.xpose.msra.mxu0 0.0
    %2161 = vmatprep.mubr.f32.mxu0 %v1713
    %2162 = vmatmul.mubr.f32.gmra.mxu0 %v1712
    %v2163 = vpop.f32.mrf.mxu0
    %v2164 = vadd.f32 %v2059, %v2163
    %v2165 = vpop.f32.mrf.mxu0
    %2166 = vmatprep.mubr.f32.mxu0 %v1721
    %2167 = vmatmul.mubr.f32.gmra.mxu0 %v1720
    %v2168 = vpop.f32.mrf.mxu0
    %v2169 = vadd.f32 %v2064, %v2168
    %v2170 = vpop.f32.mrf.mxu0
    %2171 = vmatprep.mubr.f32.mxu0 %v1729
    %2172 = vmatmul.mubr.f32.gmra.mxu0 %v1728
    %v2173 = vpop.f32.mrf.mxu0
    %v2174 = vadd.f32 %v2069, %v2173
    %v2175 = vpop.f32.mrf.mxu0
    %2176 = vmatprep.mubr.f32.mxu0 %v1737
    %2177 = vmatmul.mubr.f32.gmra.mxu0 %v1736
    %v2178 = vpop.f32.mrf.mxu0
    %v2179 = vadd.f32 %v2074, %v2178
    %v2180 = vpop.f32.mrf.mxu0
    %2181 = vmatprep.mubr.f32.mxu0 %v1745
    %2182 = vmatmul.mubr.f32.gmra.mxu0 %v1744
    %v2183 = vpop.f32.mrf.mxu0
    %v2184 = vadd.f32 %v2079, %v2183
    %v2185 = vpop.f32.mrf.mxu0
    %2186 = vmatprep.mubr.f32.mxu0 %v1753
    %2187 = vmatmul.mubr.f32.gmra.mxu0 %v1752
    %v2188 = vpop.f32.mrf.mxu0
    %v2189 = vadd.f32 %v2084, %v2188
    %v2190 = vpop.f32.mrf.mxu0
    %2191 = vmatprep.mubr.f32.mxu0 %v1761
    %2192 = vmatmul.mubr.f32.gmra.mxu0 %v1760
    %v2193 = vpop.f32.mrf.mxu0
    %v2194 = vadd.f32 %v2089, %v2193
    %v2195 = vpop.f32.mrf.mxu0
    %2196 = vmatprep.mubr.f32.mxu0 %v1769
    %2197 = vmatmul.mubr.f32.gmra.mxu0 %v1768
    %v2198 = vpop.f32.mrf.mxu0
    %v2199 = vadd.f32 %v2094, %v2198
    %v2200 = vpop.f32.mrf.mxu0
    %2201 = vdwg.mxu0
    %v2202 = vmax.f32 %v2164, 0.0
    %v2203 = vmax.f32 %v2169, 0.0
    %v2204 = vmax.f32 %v2174, 0.0
    %v2205 = vmax.f32 %v2179, 0.0
    %v2206 = vmax.f32 %v2184, 0.0
    %v2207 = vmax.f32 %v2189, 0.0
    %v2208 = vmax.f32 %v2194, 0.0
    %v2209 = vmax.f32 %v2199, 0.0
    %vm2210 = vcmask 64512
    %v2211 = vsel %vm2210, %v2202, 0.0
    %v2212 = vsel %vm2210, %v2203, 0.0
    %v2213 = vadd.f32 %v2211, %v2212
    %v2214 = vsel %vm2210, %v2204, 0.0
    %v2215 = vadd.f32 %v2213, %v2214
    %v2216 = vsel %vm2210, %v2205, 0.0
    %v2217 = vadd.f32 %v2215, %v2216
    %v2218 = vsel %vm2210, %v2206, 0.0
    %v2219 = vadd.f32 %v2217, %v2218
    %v2220 = vsel %vm2210, %v2207, 0.0
    %v2221 = vadd.f32 %v2219, %v2220
    %v2222 = vsel %vm2210, %v2208, 0.0
    %v2223 = vadd.f32 %v2221, %v2222
    %v2224 = vsel %vm2210, %v2209, 0.0
    %v2225 = vadd.f32 %v2223, %v2224
    %v2226 = vrot.slane %v2225, 4
    %v2227 = vadd.f32 %v2225, %v2226
    %v2228 = vrot.slane %v2227, 2
    %v2229 = vadd.f32 %v2227, %v2228
    %v2230 = vrot.slane %v2229, 1
    %v2231 = vadd.f32 %v2229, %v2230
    %v2232 = vmul.f32 %v2202, %v2202
    %v2233 = vmul.f32 %v2203, %v2203
    %v2234 = vmul.f32 %v2204, %v2204
    %v2235 = vmul.f32 %v2205, %v2205
    %v2236 = vmul.f32 %v2206, %v2206
    %v2237 = vmul.f32 %v2207, %v2207
    %v2238 = vmul.f32 %v2208, %v2208
    %v2239 = vmul.f32 %v2209, %v2209
    %v2240 = vsel %vm2210, %v2232, 0.0
    %v2241 = vsel %vm2210, %v2233, 0.0
    %v2242 = vadd.f32 %v2240, %v2241
    %v2243 = vsel %vm2210, %v2234, 0.0
    %v2244 = vadd.f32 %v2242, %v2243
    %v2245 = vsel %vm2210, %v2235, 0.0
    %v2246 = vadd.f32 %v2244, %v2245
    %v2247 = vsel %vm2210, %v2236, 0.0
    %v2248 = vadd.f32 %v2246, %v2247
    %v2249 = vsel %vm2210, %v2237, 0.0
    %v2250 = vadd.f32 %v2248, %v2249
    %v2251 = vsel %vm2210, %v2238, 0.0
    %v2252 = vadd.f32 %v2250, %v2251
    %v2253 = vsel %vm2210, %v2239, 0.0
    %v2254 = vadd.f32 %v2252, %v2253
    %v2255 = vrot.slane %v2254, 4
    %v2256 = vadd.f32 %v2254, %v2255
    %v2257 = vrot.slane %v2256, 2
    %v2258 = vadd.f32 %v2256, %v2257
    %v2259 = vrot.slane %v2258, 1
    %v2260 = vadd.f32 %v2258, %v2259
    %v2261 = vmul.f32 %v2231, 0.015625
    %v2262 = vmul.f32 %v2260, 0.015625
    %v2263 = vmul.f32 %v2261, %v2261
    %v2264 = vsub.f32 %v2262, %v2263
    %v2265 = vsub.f32 %v2202, %v2261
    %v2266 = vsub.f32 %v2203, %v2261
    %v2267 = vsub.f32 %v2204, %v2261
    %v2268 = vsub.f32 %v2205, %v2261
    %v2269 = vsub.f32 %v2206, %v2261
    %v2270 = vsub.f32 %v2207, %v2261
    %v2271 = vsub.f32 %v2208, %v2261
    %v2272 = vsub.f32 %v2209, %v2261
    %v2273 = vadd.f32 %v2264, 1e-05
    %v2274 = vrsqrt.pop %v2273
    %v2275 = vmul.f32 %v2265, %v2274
    %v2276 = vmul.f32 %v2266, %v2274
    %v2277 = vmul.f32 %v2267, %v2274
    %v2278 = vmul.f32 %v2268, %v2274
    %v2279 = vmul.f32 %v2269, %v2274
    %v2280 = vmul.f32 %v2270, %v2274
    %v2281 = vmul.f32 %v2271, %v2274
    %v2282 = vmul.f32 %v2272, %v2274
    %v2283 = vlaneseq
    %v2284 = vshrl.u32 %v2283, 7
    %v2285 = vsub.s32 4, %v2284
    %v2286 = vrot.slane %v69, %v2285
    %v2287 = vmul.f32 %v2275, %v2286
    %v2288 = vmul.f32 %v2276, %v2286
    %v2289 = vmul.f32 %v2277, %v2286
    %v2290 = vmul.f32 %v2278, %v2286
    %v2291 = vmul.f32 %v2279, %v2286
    %v2292 = vmul.f32 %v2280, %v2286
    %v2293 = vmul.f32 %v2281, %v2286
    %v2294 = vmul.f32 %v2282, %v2286
    %v2295 = vlaneseq
    %v2296 = vshrl.u32 %v2295, 7
    %v2297 = vsub.s32 5, %v2296
    %v2298 = vrot.slane %v69, %v2297
    %v2299 = vadd.f32 %v2287, %v2298
    %v2300 = vadd.f32 %v2288, %v2298
    %v2301 = vadd.f32 %v2289, %v2298
    %v2302 = vadd.f32 %v2290, %v2298
    %v2303 = vadd.f32 %v2291, %v2298
    %v2304 = vadd.f32 %v2292, %v2298
    %v2305 = vadd.f32 %v2293, %v2298
    %v2306 = vadd.f32 %v2294, %v2298
    %v2307 = vlaneseq
    %v2308 = vshrl.u32 %v2307, 7
    %v2309 = vsub.s32 6, %v2308
    %v2310 = vrot.slane %v69, %v2309
    %v2311 = vmul.f32 %v2299, %v2310
    %v2312 = vmul.f32 %v2300, %v2310
    %v2313 = vmul.f32 %v2301, %v2310
    %v2314 = vmul.f32 %v2302, %v2310
    %v2315 = vmul.f32 %v2303, %v2310
    %v2316 = vmul.f32 %v2304, %v2310
    %v2317 = vmul.f32 %v2305, %v2310
    %v2318 = vmul.f32 %v2306, %v2310
    %v2319 = vsel %vm2210, %v2311, 0.0
    %2320 = vadd.xlane.f32.xlu0 %v2319
    %v2321 = vpop.xlane.xlu0 %2320
    %v2322 = vsel %vm2210, %v2312, 0.0
    %2323 = vadd.xlane.f32.xlu0 %v2322
    %v2324 = vpop.xlane.xlu0 %2323
    %v2325 = vsel %vm2210, %v2313, 0.0
    %2326 = vadd.xlane.f32.xlu0 %v2325
    %v2327 = vpop.xlane.xlu0 %2326
    %v2328 = vsel %vm2210, %v2314, 0.0
    %2329 = vadd.xlane.f32.xlu0 %v2328
    %v2330 = vpop.xlane.xlu0 %2329
    %v2331 = vsel %vm2210, %v2315, 0.0
    %2332 = vadd.xlane.f32.xlu0 %v2331
    %v2333 = vpop.xlane.xlu0 %2332
    %v2334 = vsel %vm2210, %v2316, 0.0
    %2335 = vadd.xlane.f32.xlu0 %v2334
    %v2336 = vpop.xlane.xlu0 %2335
    %v2337 = vsel %vm2210, %v2317, 0.0
    %2338 = vadd.xlane.f32.xlu0 %v2337
    %v2339 = vpop.xlane.xlu0 %2338
    %v2340 = vsel %vm2210, %v2318, 0.0
    %2341 = vadd.xlane.f32.xlu0 %v2340
    %v2342 = vpop.xlane.xlu0 %2341
    %v2343 = vlaneseq
    %v2344 = vshrl.u32 %v2343, 7
    %v2345 = vsub.s32 7, %v2344
    %v2346 = vrot.slane %v69, %v2345
    %v2347 = vadd.f32 %v2321, %v2346
    %v2348 = vadd.f32 %v2324, %v2346
    %v2349 = vadd.f32 %v2327, %v2346
    %v2350 = vadd.f32 %v2330, %v2346
    %v2351 = vadd.f32 %v2333, %v2346
    %v2352 = vadd.f32 %v2336, %v2346
    %v2353 = vadd.f32 %v2339, %v2346
    %v2354 = vadd.f32 %v2342, %v2346
    %vm2355 = vcmask 7168
    %2356 = vst.msk [vmem:[%s6] sm:$0xff] %vm2355, %v2347
    %2357 = vst.msk [vmem:[%s6 + $0x8] sm:$0xff] %vm2355, %v2348
    %2358 = vst.msk [vmem:[%s6 + $0x10] sm:$0xff] %vm2355, %v2349
    %2359 = vst.msk [vmem:[%s6 + $0x18] sm:$0xff] %vm2355, %v2350
    %2360 = vst.msk [vmem:[%s6 + $0x20] sm:$0xff] %vm2355, %v2351
    %2361 = vst.msk [vmem:[%s6 + $0x28] sm:$0xff] %vm2355, %v2352
    %2362 = vst.msk [vmem:[%s6 + $0x30] sm:$0xff] %vm2355, %v2353
    %2363 = vst.msk [vmem:[%s6 + $0x38] sm:$0xff] %vm2355, %v2354
    // Predicated region
    $region38: #{tpu_custom_call.1} parent=1 // pred_check
      _
    $region39: #{tpu_custom_call.1} parent=1 // pred_check_branch
      %2365 = sbr.rel (0) target = $region41
    $region40: #{tpu_custom_call.1} parent=1 // pred_region
      _
    $region41: #{tpu_custom_call.1} parent=1 // pred_fallthru
      _
    // Predicated region
    $region42: #{tpu_custom_call.1} parent=1 // pred_check
      _
    $region43: #{tpu_custom_call.1} parent=1 // pred_check_branch
      %2367 = sbr.rel (0) target = $region45
    $region44: #{tpu_custom_call.1} parent=1 // pred_region
      _
    $region45: #{tpu_custom_call.1} parent=1 // pred_fallthru
      _
    %2368 = vsyncpa [#allocation3], 1
    %2369 = vsyncpa [#allocation5], 1

</llo_original>
